<compile_context>
chip_gen: v5e
topology: v5e:2x2
jax: 0.10.0
libtpu: 0.0.40
codegen_flags: <defaults>
</compile_context>

<pallas_src>
import functools

import jax
import jax.numpy as jnp
from jax.experimental import pallas as pl
from jax.experimental.pallas import tpu as pltpu

LEAKY_SLOPE = 0.2
BN_EPS = 1e-5

MAX_PIXEL_TILE = 4096              # lane-axis tile cap (~5-6 MiB intermediates)
SMALL_H2_BYTES = 6 * 1024 * 1024   # fused fast-path threshold for resident h2
SMALL_MAX_BATCH = 8                # static batch unroll limit on the fast path


def _leaky(x):
    return jnp.where(x >= 0.0, x, LEAKY_SLOPE * x)


def _round_up(v, m):
    return -(-v // m) * m


def _choose_pixel_tiling(hw):
    """(tile, num_tiles, hw_pad): tile is a multiple of 128, capped at
    MAX_PIXEL_TILE, chosen to minimize tail padding."""
    num_tiles = -(-hw // MAX_PIXEL_TILE)
    tile = _round_up(-(-hw // num_tiles), 128)
    return tile, num_tiles, tile * num_tiles


# ---------------------------------------------------------------------------
# Fused fast path: whole problem resident in VMEM, single kernel launch.
# ---------------------------------------------------------------------------
def _fused_kernel(x_ref, w1_ref, b1_ref, w2_ref, gamma_ref, beta_ref, w3c_ref,
                  o_ref, h2_ref, *, n, hw):
    """x_ref: (n, C_in, hw) f32, weights bf16/f32, h2_ref scratch (2ndf, n*hw) f32."""
    w1b = w1_ref[...]                       # bf16 (ndf, C_in)
    w2b = w2_ref[...]                       # bf16 (2ndf, ndf)
    b1 = b1_ref[...]                        # f32 (ndf, 1)

    # Phase 1: conv1 -> leaky -> conv2, h2 stays resident in VMEM scratch.
    for b in range(n):                      # static unroll, n is small here
        xb = x_ref[b].astype(jnp.bfloat16)  # (C_in, hw)
        h1 = _leaky(jnp.dot(w1b, xb, preferred_element_type=jnp.float32) + b1)
        h2_ref[:, pl.ds(b * hw, hw)] = jnp.dot(
            w2b, h1.astype(jnp.bfloat16), preferred_element_type=jnp.float32)

    # Phase 2: batch statistics (f32) and folded scale/shift.
    h2 = h2_ref[...]                        # (2ndf, n*hw) f32
    inv_count = 1.0 / float(n * hw)
    mean = jnp.sum(h2, axis=1, keepdims=True) * inv_count
    var = jnp.maximum(
        jnp.sum(h2 * h2, axis=1, keepdims=True) * inv_count - mean * mean, 0.0)
    scale = gamma_ref[...] * jax.lax.rsqrt(var + BN_EPS)   # (2ndf, 1)
    shift = beta_ref[...] - mean * scale
    w3c = w3c_ref[...]                                     # (2ndf, 1)

    # Phase 3: normalize, leaky, conv3 on the VPU (sublane reduction, no MXU).
    for b in range(n):
        h3 = _leaky(h2[:, b * hw:(b + 1) * hw] * scale + shift)
        o_ref[b] = jnp.sum(w3c * h3, axis=0, keepdims=True)


# ---------------------------------------------------------------------------
# Tiled two-pass path (large images): recompute h1/h2 instead of spilling.
# ---------------------------------------------------------------------------
def _stats_kernel(x_ref, w1_ref, b1_ref, w2_ref, sum_ref, sq_ref,
                  *, hw, t_pix, needs_mask):
    """Per-batch partial sum / sum-of-squares of h2 over pixel tiles.

    x_ref: (1, C_in, T)   w1: (ndf, C_in) bf16   b1: (ndf, 1) f32
    w2: (2ndf, ndf) bf16  sum_ref/sq_ref: (1, 2ndf, 1) f32 accumulators.
    """
    @pl.when(pl.program_id(1) == 0)
    def _():
        sum_ref[...] = jnp.zeros_like(sum_ref)
        sq_ref[...] = jnp.zeros_like(sq_ref)

    x = x_ref[0].astype(jnp.bfloat16)                           # (C_in, T)
    h1 = jnp.dot(w1_ref[...], x, preferred_element_type=jnp.float32)
    h1 = _leaky(h1 + b1_ref[...])
    h2 = jnp.dot(w2_ref[...], h1.astype(jnp.bfloat16),
                 preferred_element_type=jnp.float32)            # (2ndf, T) f32

    if needs_mask:  # zero out padded tail pixels so they don't bias the stats
        pix = (pl.program_id(1) * t_pix
               + jax.lax.broadcasted_iota(jnp.int32, (1, t_pix), 1))
        h2 = jnp.where(pix < hw, h2, 0.0)

    # Keepdims reduce in h2's native layout -> no sublane->lane relayout.
    # TODO(synk): if very large images show cancellation in E[x^2]-E[x]^2,
    # switch to a shifted sum-of-squares around a pilot mean.
    sum_ref[0] += jnp.sum(h2, axis=1, keepdims=True)
    sq_ref[0] += jnp.sum(h2 * h2, axis=1, keepdims=True)


def _fwd_kernel(x_ref, w1_ref, b1_ref, w2s_ref, shift_ref, w3c_ref, o_ref):
    """Recompute h1/h2 with BN-scale-folded conv2, add shift, leaky, VPU conv3.

    w2s: (2ndf, ndf) bf16 (= w2 * scale)   shift/w3c: (2ndf, 1) f32
    o_ref: (1, 1, T)
    """
    x = x_ref[0].astype(jnp.bfloat16)
    h1 = jnp.dot(w1_ref[...], x, preferred_element_type=jnp.float32)
    h1 = _leaky(h1 + b1_ref[...])
    h2 = jnp.dot(w2s_ref[...], h1.astype(jnp.bfloat16),
                 preferred_element_type=jnp.float32)
    h3 = _leaky(h2 + shift_ref[...])
    # conv3 (M=1) on VPU + sublane reduction instead of a padded MXU pass.
    o_ref[0] = jnp.sum(w3c_ref[...] * h3, axis=0, keepdims=True)


# ---------------------------------------------------------------------------
# Host wrapper
# ---------------------------------------------------------------------------
def pixel_discriminator_forward(x_nchw, params):
    """x_nchw: (N, C_in, H, W) float32 -> (N, 1, H, W) float32."""
    n, c_in, h, w = x_nchw.shape
    hw = h * w
    w1, b1, w2, gamma, beta, w3 = params
    ndf = w1.shape[0]
    ndf2 = w2.shape[0]

    # Free reshape only (no host transpose, no extra HBM pass over x).
    x3 = x_nchw.reshape(n, c_in, hw)

    # Small, one-time casts/reshapes of parameters.
    w1_bf = w1.astype(jnp.bfloat16)
    w2_bf = w2.astype(jnp.bfloat16)
    b1c = b1.reshape(ndf, 1).astype(jnp.float32)
    gamma_c = gamma.reshape(ndf2, 1).astype(jnp.float32)
    beta_c = beta.reshape(ndf2, 1).astype(jnp.float32)
    w3c = w3.reshape(ndf2, 1).astype(jnp.float32)   # column layout for VPU conv3

    # ---- Small-problem fast path: single fused call, h2 resident in VMEM ----
    h2_bytes = ndf2 * n * hw * 4
    if (hw % 128 == 0) and (n <= SMALL_MAX_BATCH) and (h2_bytes <= SMALL_H2_BYTES):
        out = pl.pallas_call(
            functools.partial(_fused_kernel, n=n, hw=hw),
            out_shape=jax.ShapeDtypeStruct((n, 1, hw), jnp.float32),
            scratch_shapes=[pltpu.VMEM((ndf2, n * hw), jnp.float32)],
        )(x3, w1_bf, b1c, w2_bf, gamma_c, beta_c, w3c)
        return out.reshape(n, 1, h, w)

    # ---- Tiled two-pass path ----
    t_pix, num_tiles, hw_pad = _choose_pixel_tiling(hw)
    needs_mask = hw_pad != hw
    if needs_mask:
        x3 = jnp.pad(x3, ((0, 0), (0, 0), (0, hw_pad - hw)))

    grid = (n, num_tiles)

    x_spec = pl.BlockSpec((1, c_in, t_pix), lambda ni, ti: (ni, 0, ti))
    w1_spec = pl.BlockSpec((ndf, c_in), lambda ni, ti: (0, 0))
    b1_spec = pl.BlockSpec((ndf, 1), lambda ni, ti: (0, 0))
    w2_spec = pl.BlockSpec((ndf2, ndf), lambda ni, ti: (0, 0))
    vec_spec = pl.BlockSpec((ndf2, 1), lambda ni, ti: (0, 0))
    stat_spec = pl.BlockSpec((1, ndf2, 1), lambda ni, ti: (ni, 0, 0))
    out_spec = pl.BlockSpec((1, 1, t_pix), lambda ni, ti: (ni, 0, ti))

    # Pass 1: per-batch partial BN statistics.  Batch axis is 'parallel'
    # (v7x megacore shards it); pixel axis is 'arbitrary' (sequential accum).
    sums, sqs = pl.pallas_call(
        functools.partial(_stats_kernel, hw=hw, t_pix=t_pix,
                          needs_mask=needs_mask),
        out_shape=(jax.ShapeDtypeStruct((n, ndf2, 1), jnp.float32),
                   jax.ShapeDtypeStruct((n, ndf2, 1), jnp.float32)),
        grid=grid,
        in_specs=[x_spec, w1_spec, b1_spec, w2_spec],
        out_specs=(stat_spec, stat_spec),
        compiler_params=pltpu.CompilerParams(
            dimension_semantics=("parallel", "arbitrary")),
    )(x3, w1_bf, b1c, w2_bf)

    # Host-side fold: reduce partials, BN (training-mode, biased variance),
    # and fold the per-channel scale into conv2's rows for pass 2.
    count = jnp.float32(n * hw)
    mean = jnp.sum(sums, axis=0) / count                       # (2ndf, 1)
    var = jnp.maximum(jnp.sum(sqs, axis=0) / count - mean * mean, 0.0)
    inv_std = jax.lax.rsqrt(var + BN_EPS)
    scale = gamma_c * inv_std                                  # (2ndf, 1)
    shift = beta_c - mean * scale                              # (2ndf, 1)
    w2s_bf = (w2 * scale).astype(jnp.bfloat16)                 # scale folded

    # Pass 2: normalized forward, lane-dense output tiles, fully parallel grid.
    out = pl.pallas_call(
        _fwd_kernel,
        out_shape=jax.ShapeDtypeStruct((n, 1, hw_pad), jnp.float32),
        grid=grid,
        in_specs=[x_spec, w1_spec, b1_spec, w2_spec, vec_spec, vec_spec],
        out_specs=out_spec,
        compiler_params=pltpu.CompilerParams(
            dimension_semantics=("parallel", "parallel")),
    )(x3, w1_bf, b1c, w2s_bf, shift, w3c)

    if needs_mask:
        out = out[:, :, :hw]
    return out.reshape(n, 1, h, w)


# ---------------------------------------------------------------------------
# Parameters / reference
# ---------------------------------------------------------------------------
def init_params(key, input_nc, ndf=64):
    """Deterministic synthetic parameters in W @ X orientation
    (PyTorch conv weight (C_out, C_in, 1, 1) squeezed to (C_out, C_in))."""
    k1, k2, k3, k4 = jax.random.split(key, 4)
    w1 = jax.random.normal(k1, (ndf, input_nc), jnp.float32) * 0.1
    b1 = jax.random.normal(k2, (ndf, 1), jnp.float32) * 0.1
    w2 = jax.random.normal(k3, (2 * ndf, ndf), jnp.float32) * 0.1
    gamma = jnp.ones((2 * ndf,), jnp.float32)   # BatchNorm2d default init
    beta = jnp.zeros((2 * ndf,), jnp.float32)
    w3 = jax.random.normal(k4, (1, 2 * ndf), jnp.float32) * 0.1
    return (w1, b1, w2, gamma, beta, w3)


def _reference_forward(x_nchw, params):
    """Pure-JAX f32 reference (PyTorch BatchNorm2d training semantics)."""
    n, c_in, h, w = x_nchw.shape
    w1, b1, w2, gamma, beta, w3 = params
    xm = jnp.transpose(x_nchw, (0, 2, 3, 1)).reshape(-1, c_in)   # (M, C_in)
    h1 = _leaky(xm @ w1.T + b1.reshape(1, -1))
    h2 = h1 @ w2.T
    mean = jnp.mean(h2, axis=0)
    var = jnp.mean((h2 - mean) ** 2, axis=0)                      # biased
    hn = (h2 - mean) * jax.lax.rsqrt(var + BN_EPS) * gamma + beta
    o = _leaky(hn) @ w3.T                                         # (M, 1)
    return jnp.transpose(o.reshape(n, h, w, 1), (0, 3, 1, 2))


if __name__ == "__main__":
    key = jax.random.PRNGKey(0)
    kx, kp = jax.random.split(key)

    N, C_IN, H, W = 2, 4, 16, 16
    NDF = 64

    params = init_params(kp, C_IN, NDF)
    fwd = jax.jit(pixel_discriminator_forward)

    # bf16 MXU operands -> compare against the f32 reference at bf16 tolerance.
    RTOL = ATOL = 2e-2

    # 1) Primary small shape: fused single-call fast path.
    x = jax.random.normal(kx, (N, C_IN, H, W), jnp.float32)
    out = fwd(x, params)
    jax.block_until_ready(out)
    assert out.shape == (N, 1, H, W), out.shape
    assert out.dtype == jnp.float32
    ref = _reference_forward(x, params)
    assert jnp.allclose(out, ref, rtol=RTOL, atol=ATOL), (
        float(jnp.max(jnp.abs(out - ref))))

    # 2) Tiled two-pass path: (50x50) exercises the padded/masked tail,
    #    (80x80) exercises multi-tile stat accumulation.
    for hh, ww in ((50, 50), (80, 80)):
        x2 = jax.random.normal(kx, (N, C_IN, hh, ww), jnp.float32)
        o2 = fwd(x2, params)
        jax.block_until_ready(o2)
        assert o2.shape == (N, 1, hh, ww), o2.shape
        r2 = _reference_forward(x2, params)
        assert jnp.allclose(o2, r2, rtol=RTOL, atol=ATOL), (
            float(jnp.max(jnp.abs(o2 - r2))))

    print("KERNEL_OK")
</pallas_src>

<mosaic_0001>
module attributes {stable_mosaic.version = 11 : i64} {
  func.func @_fused_kernel(%arg0: memref<2x4x256xf32, #tpu.memory_space<vmem>>, %arg1: memref<64x4xbf16, #tpu.memory_space<vmem>>, %arg2: memref<64x1xf32, #tpu.memory_space<vmem>>, %arg3: memref<128x64xbf16, #tpu.memory_space<vmem>>, %arg4: memref<128x1xf32, #tpu.memory_space<vmem>>, %arg5: memref<128x1xf32, #tpu.memory_space<vmem>>, %arg6: memref<128x1xf32, #tpu.memory_space<vmem>>, %arg7: memref<2x1x256xf32, #tpu.memory_space<vmem>>, %arg8: memref<128x512xf32, #tpu.memory_space<vmem>>) attributes {dimension_semantics = [], scalar_prefetch = 0 : i64, scratch_operands = 1 : i64, tpu.core_type = #tpu.core_type<tc>} {
    %c0 = arith.constant 0 : index
    %c0_0 = arith.constant 0 : index
    %0 = vector.load %arg1[%c0, %c0_0] : memref<64x4xbf16, #tpu.memory_space<vmem>>, vector<64x4xbf16>
    %c0_1 = arith.constant 0 : index
    %c0_2 = arith.constant 0 : index
    %1 = vector.load %arg3[%c0_1, %c0_2] : memref<128x64xbf16, #tpu.memory_space<vmem>>, vector<128x64xbf16>
    %c0_3 = arith.constant 0 : index
    %c0_4 = arith.constant 0 : index
    %2 = vector.load %arg2[%c0_3, %c0_4] : memref<64x1xf32, #tpu.memory_space<vmem>>, vector<64x1xf32>
    %c0_5 = arith.constant 0 : index
    %c0_6 = arith.constant 0 : index
    %c0_7 = arith.constant 0 : index
    %3 = vector.load %arg0[%c0_5, %c0_6, %c0_7] : memref<2x4x256xf32, #tpu.memory_space<vmem>>, vector<1x4x256xf32>
    %4 = vector.shape_cast %3 : vector<1x4x256xf32> to vector<4x256xf32>
    %5 = arith.truncf %4 : vector<4x256xf32> to vector<4x256xbf16>
    %cst = arith.constant dense<0.000000e+00> : vector<64x256xf32>
    %6 = tpu.matmul %0, %5, %cst {dimension_numbers = #tpu.dot_dimension_numbers<[1], [0], [0], [1], [0, 0, 1, 1], [], []>} : vector<64x4xbf16>, vector<4x256xbf16>, vector<64x256xf32> -> vector<64x256xf32>
    %7 = vector.broadcast %2 : vector<64x1xf32> to vector<64x256xf32>
    %8 = arith.addf %6, %7 : vector<64x256xf32>
    %cst_8 = arith.constant 0.000000e+00 : f32
    %9 = vector.broadcast %cst_8 : f32 to vector<64x256xf32>
    %10 = arith.cmpf oge, %8, %9 : vector<64x256xf32>
    %cst_9 = arith.constant 2.000000e-01 : f32
    %11 = vector.broadcast %cst_9 : f32 to vector<64x256xf32>
    %12 = arith.mulf %11, %8 : vector<64x256xf32>
    %13 = arith.select %10, %8, %12 : vector<64x256xi1>, vector<64x256xf32>
    %14 = arith.truncf %13 : vector<64x256xf32> to vector<64x256xbf16>
    %cst_10 = arith.constant dense<0.000000e+00> : vector<128x256xf32>
    %15 = tpu.matmul %1, %14, %cst_10 {dimension_numbers = #tpu.dot_dimension_numbers<[1], [0], [0], [1], [0, 0, 1, 1], [], []>} : vector<128x64xbf16>, vector<64x256xbf16>, vector<128x256xf32> -> vector<128x256xf32>
    %c0_11 = arith.constant 0 : index
    %c0_12 = arith.constant 0 : index
    %16 = vector.load %arg8[%c0_11, %c0_12] : memref<128x512xf32, #tpu.memory_space<vmem>>, vector<128x256xf32>
    tpu.vector_store %arg8[%c0_11, %c0_12], %15 {strides = array<i32>} : memref<128x512xf32, #tpu.memory_space<vmem>>, vector<128x256xf32>,
    %c1 = arith.constant 1 : index
    %c0_13 = arith.constant 0 : index
    %c0_14 = arith.constant 0 : index
    %17 = vector.load %arg0[%c1, %c0_13, %c0_14] : memref<2x4x256xf32, #tpu.memory_space<vmem>>, vector<1x4x256xf32>
    %18 = vector.shape_cast %17 : vector<1x4x256xf32> to vector<4x256xf32>
    %19 = arith.truncf %18 : vector<4x256xf32> to vector<4x256xbf16>
    %cst_15 = arith.constant dense<0.000000e+00> : vector<64x256xf32>
    %20 = tpu.matmul %0, %19, %cst_15 {dimension_numbers = #tpu.dot_dimension_numbers<[1], [0], [0], [1], [0, 0, 1, 1], [], []>} : vector<64x4xbf16>, vector<4x256xbf16>, vector<64x256xf32> -> vector<64x256xf32>
    %21 = vector.broadcast %2 : vector<64x1xf32> to vector<64x256xf32>
    %22 = arith.addf %20, %21 : vector<64x256xf32>
    %cst_16 = arith.constant 0.000000e+00 : f32
    %23 = vector.broadcast %cst_16 : f32 to vector<64x256xf32>
    %24 = arith.cmpf oge, %22, %23 : vector<64x256xf32>
    %cst_17 = arith.constant 2.000000e-01 : f32
    %25 = vector.broadcast %cst_17 : f32 to vector<64x256xf32>
    %26 = arith.mulf %25, %22 : vector<64x256xf32>
    %27 = arith.select %24, %22, %26 : vector<64x256xi1>, vector<64x256xf32>
    %28 = arith.truncf %27 : vector<64x256xf32> to vector<64x256xbf16>
    %cst_18 = arith.constant dense<0.000000e+00> : vector<128x256xf32>
    %29 = tpu.matmul %1, %28, %cst_18 {dimension_numbers = #tpu.dot_dimension_numbers<[1], [0], [0], [1], [0, 0, 1, 1], [], []>} : vector<128x64xbf16>, vector<64x256xbf16>, vector<128x256xf32> -> vector<128x256xf32>
    %c0_19 = arith.constant 0 : index
    %c256 = arith.constant 256 : index
    %30 = vector.load %arg8[%c0_19, %c256] : memref<128x512xf32, #tpu.memory_space<vmem>>, vector<128x256xf32>
    tpu.vector_store %arg8[%c0_19, %c256], %29 {strides = array<i32>} : memref<128x512xf32, #tpu.memory_space<vmem>>, vector<128x256xf32>,
    %c0_20 = arith.constant 0 : index
    %c0_21 = arith.constant 0 : index
    %31 = vector.load %arg8[%c0_20, %c0_21] : memref<128x512xf32, #tpu.memory_space<vmem>>, vector<128x512xf32>
    %cst_22 = arith.constant dense<0.000000e+00> : vector<128xf32>
    %32 = vector.multi_reduction <add>, %31, %cst_22 [1] : vector<128x512xf32> to vector<128xf32>
    %33 = vector.shape_cast %32 : vector<128xf32> to vector<128x1xf32>
    %cst_23 = arith.constant 0.001953125 : f32
    %34 = vector.broadcast %cst_23 : f32 to vector<128x1xf32>
    %35 = arith.mulf %33, %34 : vector<128x1xf32>
    %36 = arith.mulf %31, %31 : vector<128x512xf32>
    %cst_24 = arith.constant dense<0.000000e+00> : vector<128xf32>
    %37 = vector.multi_reduction <add>, %36, %cst_24 [1] : vector<128x512xf32> to vector<128xf32>
    %38 = vector.shape_cast %37 : vector<128xf32> to vector<128x1xf32>
    %cst_25 = arith.constant 0.001953125 : f32
    %39 = vector.broadcast %cst_25 : f32 to vector<128x1xf32>
    %40 = arith.mulf %38, %39 : vector<128x1xf32>
    %41 = arith.mulf %35, %35 : vector<128x1xf32>
    %42 = arith.subf %40, %41 : vector<128x1xf32>
    %cst_26 = arith.constant 0.000000e+00 : f32
    %43 = vector.broadcast %cst_26 : f32 to vector<128x1xf32>
    %44 = arith.maximumf %42, %43 : vector<128x1xf32>
    %c0_27 = arith.constant 0 : index
    %c0_28 = arith.constant 0 : index
    %45 = vector.load %arg4[%c0_27, %c0_28] : memref<128x1xf32, #tpu.memory_space<vmem>>, vector<128x1xf32>
    %cst_29 = arith.constant 9.99999974E-6 : f32
    %46 = vector.broadcast %cst_29 : f32 to vector<128x1xf32>
    %47 = arith.addf %44, %46 : vector<128x1xf32>
    %48 = math.rsqrt %47 : vector<128x1xf32>
    %49 = arith.mulf %45, %48 : vector<128x1xf32>
    %c0_30 = arith.constant 0 : index
    %c0_31 = arith.constant 0 : index
    %50 = vector.load %arg5[%c0_30, %c0_31] : memref<128x1xf32, #tpu.memory_space<vmem>>, vector<128x1xf32>
    %51 = arith.mulf %35, %49 : vector<128x1xf32>
    %52 = arith.subf %50, %51 : vector<128x1xf32>
    %c0_32 = arith.constant 0 : index
    %c0_33 = arith.constant 0 : index
    %53 = vector.load %arg6[%c0_32, %c0_33] : memref<128x1xf32, #tpu.memory_space<vmem>>, vector<128x1xf32>
    %54 = vector.extract_strided_slice %31 {offsets = [0, 0], sizes = [128, 256], strides = [1, 1]} : vector<128x512xf32> to vector<128x256xf32>
    %55 = vector.broadcast %49 : vector<128x1xf32> to vector<128x256xf32>
    %56 = arith.mulf %54, %55 : vector<128x256xf32>
    %57 = vector.broadcast %52 : vector<128x1xf32> to vector<128x256xf32>
    %58 = arith.addf %56, %57 : vector<128x256xf32>
    %cst_34 = arith.constant 0.000000e+00 : f32
    %59 = vector.broadcast %cst_34 : f32 to vector<128x256xf32>
    %60 = arith.cmpf oge, %58, %59 : vector<128x256xf32>
    %cst_35 = arith.constant 2.000000e-01 : f32
    %61 = vector.broadcast %cst_35 : f32 to vector<128x256xf32>
    %62 = arith.mulf %61, %58 : vector<128x256xf32>
    %63 = arith.select %60, %58, %62 : vector<128x256xi1>, vector<128x256xf32>
    %64 = vector.broadcast %53 : vector<128x1xf32> to vector<128x256xf32>
    %65 = arith.mulf %64, %63 : vector<128x256xf32>
    %cst_36 = arith.constant dense<0.000000e+00> : vector<256xf32>
    %66 = vector.multi_reduction <add>, %65, %cst_36 [0] : vector<128x256xf32> to vector<256xf32>
    %67 = vector.shape_cast %66 : vector<256xf32> to vector<1x256xf32>
    %c0_37 = arith.constant 0 : index
    %c0_38 = arith.constant 0 : index
    %c0_39 = arith.constant 0 : index
    %68 = vector.load %arg7[%c0_37, %c0_38, %c0_39] : memref<2x1x256xf32, #tpu.memory_space<vmem>>, vector<1x1x256xf32>
    %69 = vector.shape_cast %68 : vector<1x1x256xf32> to vector<1x256xf32>
    %70 = vector.shape_cast %67 : vector<1x256xf32> to vector<1x1x256xf32>
    tpu.vector_store %arg7[%c0_37, %c0_38, %c0_39], %70 {strides = array<i32>} : memref<2x1x256xf32, #tpu.memory_space<vmem>>, vector<1x1x256xf32>,
    %71 = vector.extract_strided_slice %31 {offsets = [0, 256], sizes = [128, 256], strides = [1, 1]} : vector<128x512xf32> to vector<128x256xf32>
    %72 = vector.broadcast %49 : vector<128x1xf32> to vector<128x256xf32>
    %73 = arith.mulf %71, %72 : vector<128x256xf32>
    %74 = vector.broadcast %52 : vector<128x1xf32> to vector<128x256xf32>
    %75 = arith.addf %73, %74 : vector<128x256xf32>
    %cst_40 = arith.constant 0.000000e+00 : f32
    %76 = vector.broadcast %cst_40 : f32 to vector<128x256xf32>
    %77 = arith.cmpf oge, %75, %76 : vector<128x256xf32>
    %cst_41 = arith.constant 2.000000e-01 : f32
    %78 = vector.broadcast %cst_41 : f32 to vector<128x256xf32>
    %79 = arith.mulf %78, %75 : vector<128x256xf32>
    %80 = arith.select %77, %75, %79 : vector<128x256xi1>, vector<128x256xf32>
    %81 = vector.broadcast %53 : vector<128x1xf32> to vector<128x256xf32>
    %82 = arith.mulf %81, %80 : vector<128x256xf32>
    %cst_42 = arith.constant dense<0.000000e+00> : vector<256xf32>
    %83 = vector.multi_reduction <add>, %82, %cst_42 [0] : vector<128x256xf32> to vector<256xf32>
    %84 = vector.shape_cast %83 : vector<256xf32> to vector<1x256xf32>
    %c1_43 = arith.constant 1 : index
    %c0_44 = arith.constant 0 : index
    %c0_45 = arith.constant 0 : index
    %85 = vector.load %arg7[%c1_43, %c0_44, %c0_45] : memref<2x1x256xf32, #tpu.memory_space<vmem>>, vector<1x1x256xf32>
    %86 = vector.shape_cast %85 : vector<1x1x256xf32> to vector<1x256xf32>
    %87 = vector.shape_cast %84 : vector<1x256xf32> to vector<1x1x256xf32>
    tpu.vector_store %arg7[%c1_43, %c0_44, %c0_45], %87 {strides = array<i32>} : memref<2x1x256xf32, #tpu.memory_space<vmem>>, vector<1x1x256xf32>,
    return
  }
}

</mosaic_0001>

<llo_original>
// kernel: pixel_discriminator_forward.1
$region0: #{pixel_discriminator_forward.1}
  #allocation0 [shape = 'u32[]', space=smem, size = 0x4, offset = 0x4, fixed_abs, tag = 'smem constant byte address 0x4 - core index']
  #allocation1 [shape = 'u32[72,128]{1,0:T(1,128)}', space=vmem, size = 0x9000, scoped, tag = 'internal scratch']
  #allocation2 [shape = 'f32[128,512]{1,0:T(8,128)}', space=vmem, size = 0x40000, scoped, tag = 'scratch operand']
  %s0 = inlined_call_operand.vmem [shape: f32[2,4,256], index: 0, kind: input, shape index: {}]
  %s1 = inlined_call_operand.vmem [shape: bf16[64,4], index: 1, kind: input, shape index: {}]
  %s2 = inlined_call_operand.vmem [shape: f32[64,1], index: 2, kind: input, shape index: {}]
  %s3 = inlined_call_operand.vmem [shape: bf16[128,64], index: 3, kind: input, shape index: {}]
  %s4 = inlined_call_operand.vmem [shape: f32[128,1], index: 4, kind: input, shape index: {}]
  %s5 = inlined_call_operand.vmem [shape: f32[128,1], index: 5, kind: input, shape index: {}]
  %s6 = inlined_call_operand.vmem [shape: f32[128,1], index: 6, kind: input, shape index: {}]
  %s7 = inlined_call_operand.vmem [shape: f32[2,1,256], index: 7, kind: output, shape index: {}]
  %s8 = sld [smem:[#allocation0]]
  $region38: #{pixel_discriminator_forward.1} parent=0
    _
  %s10 = ssub.s32 1, %s8
  %s11 = scalar_select 0, %s10, %s8
  // Predicated region
  $region2: #{pixel_discriminator_forward.1} parent=0 // pred_check
    _
  $region3: #{pixel_discriminator_forward.1} parent=0 // pred_check_branch
    %13 = sbr.rel (0) target = $region5
  $region4: #{pixel_discriminator_forward.1} parent=0 // pred_region
    _
  $region5: #{pixel_discriminator_forward.1} parent=0 // pred_fallthru
    _
  // Predicated region
  $region6: #{pixel_discriminator_forward.1} parent=0 // pred_check
    _
  $region7: #{pixel_discriminator_forward.1} parent=0 // pred_check_branch
    %15 = sbr.rel (0) target = $region9
  $region8: #{pixel_discriminator_forward.1} parent=0 // pred_region
    _
  $region9: #{pixel_discriminator_forward.1} parent=0 // pred_fallthru
    _
  // Predicated region
  $region10: #{pixel_discriminator_forward.1} parent=0 // pred_check
    _
  $region11: #{pixel_discriminator_forward.1} parent=0 // pred_check_branch
    %17 = sbr.rel (0) target = $region13
  $region12: #{pixel_discriminator_forward.1} parent=0 // pred_region
    _
  $region13: #{pixel_discriminator_forward.1} parent=0 // pred_fallthru
    _
  // Predicated region
  $region14: #{pixel_discriminator_forward.1} parent=0 // pred_check
    _
  $region15: #{pixel_discriminator_forward.1} parent=0 // pred_check_branch
    %19 = sbr.rel (0) target = $region17
  $region16: #{pixel_discriminator_forward.1} parent=0 // pred_region
    _
  $region17: #{pixel_discriminator_forward.1} parent=0 // pred_fallthru
    _
  // Predicated region
  $region18: #{pixel_discriminator_forward.1} parent=0 // pred_check
    _
  $region19: #{pixel_discriminator_forward.1} parent=0 // pred_check_branch
    %21 = sbr.rel (0) target = $region21
  $region20: #{pixel_discriminator_forward.1} parent=0 // pred_region
    _
  $region21: #{pixel_discriminator_forward.1} parent=0 // pred_fallthru
    _
  // Predicated region
  $region22: #{pixel_discriminator_forward.1} parent=0 // pred_check
    _
  $region23: #{pixel_discriminator_forward.1} parent=0 // pred_check_branch
    %23 = sbr.rel (0) target = $region25
  $region24: #{pixel_discriminator_forward.1} parent=0 // pred_region
    _
  $region25: #{pixel_discriminator_forward.1} parent=0 // pred_fallthru
    _
  // Predicated region
  $region26: #{pixel_discriminator_forward.1} parent=0 // pred_check
    _
  $region27: #{pixel_discriminator_forward.1} parent=0 // pred_check_branch
    %25 = sbr.rel (0) target = $region29
  $region28: #{pixel_discriminator_forward.1} parent=0 // pred_region
    _
  $region29: #{pixel_discriminator_forward.1} parent=0 // pred_fallthru
    _
  %v27 = vld [vmem:[%s1] sm:$0xf]
  %v28 = vld [vmem:[%s1 + $0x4] sm:$0xf]
  %v29 = vld [vmem:[%s1 + $0x8] sm:$0xf]
  %v30 = vld [vmem:[%s1 + $0xc] sm:$0xf]
  %v31 = vld [vmem:[%s1 + $0x10] sm:$0xf]
  %v32 = vld [vmem:[%s1 + $0x14] sm:$0xf]
  %v33 = vld [vmem:[%s1 + $0x18] sm:$0xf]
  %v34 = vld [vmem:[%s1 + $0x1c] sm:$0xf]
  %v35 = vld [vmem:[%s3] sm:$0xf]
  %v36 = vld [vmem:[%s3 + $0x4] sm:$0xf]
  %v37 = vld [vmem:[%s3 + $0x8] sm:$0xf]
  %v38 = vld [vmem:[%s3 + $0xc] sm:$0xf]
  %v39 = vld [vmem:[%s3 + $0x10] sm:$0xf]
  %v40 = vld [vmem:[%s3 + $0x14] sm:$0xf]
  %v41 = vld [vmem:[%s3 + $0x18] sm:$0xf]
  %v42 = vld [vmem:[%s3 + $0x1c] sm:$0xf]
  %v43 = vld [vmem:[%s3 + $0x20] sm:$0xf]
  %v44 = vld [vmem:[%s3 + $0x24] sm:$0xf]
  %v45 = vld [vmem:[%s3 + $0x28] sm:$0xf]
  %v46 = vld [vmem:[%s3 + $0x2c] sm:$0xf]
  %v47 = vld [vmem:[%s3 + $0x30] sm:$0xf]
  %v48 = vld [vmem:[%s3 + $0x34] sm:$0xf]
  %v49 = vld [vmem:[%s3 + $0x38] sm:$0xf]
  %v50 = vld [vmem:[%s3 + $0x3c] sm:$0xf]
  %v51 = vld [vmem:[%s2] sm:$0xff]
  %v52 = vld [vmem:[%s2 + $0x8] sm:$0xff]
  %v53 = vld [vmem:[%s2 + $0x10] sm:$0xff]
  %v54 = vld [vmem:[%s2 + $0x18] sm:$0xff]
  %v55 = vld [vmem:[%s2 + $0x20] sm:$0xff]
  %v56 = vld [vmem:[%s2 + $0x28] sm:$0xff]
  %v57 = vld [vmem:[%s2 + $0x30] sm:$0xff]
  %v58 = vld [vmem:[%s2 + $0x38] sm:$0xff]
  %v59 = vld [vmem:[%s0] sm:$0xff]
  %61 = vst [vmem:[#allocation1] ss:$2 sm:$0xff] %v59
  %v62 = vld.sshfl [vmem:[#allocation1] sm:$0xff pattern:$0x75316420]
  %v63 = vld.sshfl [vmem:[#allocation1 + $0x8] sm:$0xff pattern:$0x75316420]
  %v66 = vpack.c.bf16 %v62, %v62
  %v67 = vpack.c.bf16 %v63, %v63
  %69 = vset.pattern.permute.xlu0 0
  %70 = vperm.xlu0 %69, %v51
  %v71 = vpop.permute.xlu0 %70
  %74 = vset.pattern.permute.xlu0 0
  %75 = vperm.xlu0 %74, %v52
  %v76 = vpop.permute.xlu0 %75
  %79 = vset.pattern.permute.xlu0 0
  %80 = vperm.xlu0 %79, %v53
  %v81 = vpop.permute.xlu0 %80
  %84 = vset.pattern.permute.xlu0 0
  %85 = vperm.xlu0 %84, %v54
  %v86 = vpop.permute.xlu0 %85
  %89 = vset.pattern.permute.xlu0 0
  %90 = vperm.xlu0 %89, %v55
  %v91 = vpop.permute.xlu0 %90
  %94 = vset.pattern.permute.xlu0 0
  %95 = vperm.xlu0 %94, %v56
  %v96 = vpop.permute.xlu0 %95
  %99 = vset.pattern.permute.xlu0 0
  %100 = vperm.xlu0 %99, %v57
  %v101 = vpop.permute.xlu0 %100
  %104 = vset.pattern.permute.xlu0 0
  %105 = vperm.xlu0 %104, %v58
  %v106 = vpop.permute.xlu0 %105
  %v116 = vunpack.c.l.b16 %v27
  %v117 = vunpack.c.l.b16 %v28
  %v118 = vunpack.c.l.b16 %v29
  %v119 = vunpack.c.l.b16 %v30
  %v120 = vunpack.c.l.b16 %v31
  %v121 = vunpack.c.l.b16 %v32
  %v122 = vunpack.c.l.b16 %v33
  %v123 = vunpack.c.l.b16 %v34
  %v124 = vpack.c.b16 %v117, %v116
  %v125 = vpack.c.b16 %v119, %v118
  %v126 = vpack.c.b16 %v121, %v120
  %v127 = vpack.c.b16 %v123, %v122
  %vm128 = vcmask 31744
  %v130 = vsel %vm128, %v124, 0
  %v133 = vsel %vm128, %v125, 0
  %v136 = vsel %vm128, %v126, 0
  %v139 = vsel %vm128, %v127, 0
  %vm141 = vcmask 1041408
  %v143 = vsel %vm141, %v66, 0
  %v146 = vsel %vm141, %v67, 0
  %148 = vmatpush.bf16.msra.mxu0 0
  %149 = vmatpush.bf16.msra.mxu0 0
  %150 = vmatpush.bf16.msra.mxu0 0
  %151 = vmatpush.bf16.msra.mxu0 0
  %152 = vmatpush.bf16.msra.mxu0 0
  %153 = vmatpush.bf16.msra.mxu0 0
  %154 = vmatpush.bf16.msra.mxu0 0
  %155 = vmatpush.bf16.msra.mxu0 %v143
  %156 = vmatmul.bf16.gmra.mxu0 %v130
  %v157 = vpop.f32.mrf.mxu0
  %v158 = vadd.f32 %v71, %v157
  %v159 = vpop.f32.mrf.mxu0
  %v160 = vadd.f32 %v76, %v159
  %161 = vmatmul.bf16.gmra.mxu0 %v133
  %v162 = vpop.f32.mrf.mxu0
  %v163 = vadd.f32 %v81, %v162
  %v164 = vpop.f32.mrf.mxu0
  %v165 = vadd.f32 %v86, %v164
  %166 = vmatmul.bf16.gmra.mxu0 %v136
  %v167 = vpop.f32.mrf.mxu0
  %v168 = vadd.f32 %v91, %v167
  %v169 = vpop.f32.mrf.mxu0
  %v170 = vadd.f32 %v96, %v169
  %171 = vmatmul.bf16.gmra.mxu0 %v139
  %v172 = vpop.f32.mrf.mxu0
  %v173 = vadd.f32 %v101, %v172
  %v174 = vpop.f32.mrf.mxu0
  %v175 = vadd.f32 %v106, %v174
  %176 = vdwg.mxu0
  %177 = vmatpush.bf16.msra.mxu0 0
  %178 = vmatpush.bf16.msra.mxu0 0
  %179 = vmatpush.bf16.msra.mxu0 0
  %180 = vmatpush.bf16.msra.mxu0 0
  %181 = vmatpush.bf16.msra.mxu0 0
  %182 = vmatpush.bf16.msra.mxu0 0
  %183 = vmatpush.bf16.msra.mxu0 0
  %184 = vmatpush.bf16.msra.mxu0 %v146
  %185 = vmatmul.bf16.gmra.mxu0 %v130
  %v186 = vpop.f32.mrf.mxu0
  %v187 = vadd.f32 %v71, %v186
  %v188 = vpop.f32.mrf.mxu0
  %v189 = vadd.f32 %v76, %v188
  %190 = vmatmul.bf16.gmra.mxu0 %v133
  %v191 = vpop.f32.mrf.mxu0
  %v192 = vadd.f32 %v81, %v191
  %v193 = vpop.f32.mrf.mxu0
  %v194 = vadd.f32 %v86, %v193
  %195 = vmatmul.bf16.gmra.mxu0 %v136
  %v196 = vpop.f32.mrf.mxu0
  %v197 = vadd.f32 %v91, %v196
  %v198 = vpop.f32.mrf.mxu0
  %v199 = vadd.f32 %v96, %v198
  %200 = vmatmul.bf16.gmra.mxu0 %v139
  %v201 = vpop.f32.mrf.mxu0
  %v202 = vadd.f32 %v101, %v201
  %v203 = vpop.f32.mrf.mxu0
  %v204 = vadd.f32 %v106, %v203
  %205 = vdwg.mxu0
  %vm206 = vcmp.ge.f32.partialorder %v158, 0.0
  %vm207 = vcmp.ge.f32.partialorder %v187, 0.0
  %vm208 = vcmp.ge.f32.partialorder %v160, 0.0
  %vm209 = vcmp.ge.f32.partialorder %v189, 0.0
  %vm210 = vcmp.ge.f32.partialorder %v163, 0.0
  %vm211 = vcmp.ge.f32.partialorder %v192, 0.0
  %vm212 = vcmp.ge.f32.partialorder %v165, 0.0
  %vm213 = vcmp.ge.f32.partialorder %v194, 0.0
  %vm214 = vcmp.ge.f32.partialorder %v168, 0.0
  %vm215 = vcmp.ge.f32.partialorder %v197, 0.0
  %vm216 = vcmp.ge.f32.partialorder %v170, 0.0
  %vm217 = vcmp.ge.f32.partialorder %v199, 0.0
  %vm218 = vcmp.ge.f32.partialorder %v173, 0.0
  %vm219 = vcmp.ge.f32.partialorder %v202, 0.0
  %vm220 = vcmp.ge.f32.partialorder %v175, 0.0
  %vm221 = vcmp.ge.f32.partialorder %v204, 0.0
  %v222 = vmul.f32 %v158, 0.2
  %v223 = vmul.f32 %v187, 0.2
  %v224 = vmul.f32 %v160, 0.2
  %v225 = vmul.f32 %v189, 0.2
  %v226 = vmul.f32 %v163, 0.2
  %v227 = vmul.f32 %v192, 0.2
  %v228 = vmul.f32 %v165, 0.2
  %v229 = vmul.f32 %v194, 0.2
  %v230 = vmul.f32 %v168, 0.2
  %v231 = vmul.f32 %v197, 0.2
  %v232 = vmul.f32 %v170, 0.2
  %v233 = vmul.f32 %v199, 0.2
  %v234 = vmul.f32 %v173, 0.2
  %v235 = vmul.f32 %v202, 0.2
  %v236 = vmul.f32 %v175, 0.2
  %v237 = vmul.f32 %v204, 0.2
  %v238 = vsel %vm206, %v158, %v222
  %v239 = vsel %vm207, %v187, %v223
  %v240 = vsel %vm208, %v160, %v224
  %v241 = vsel %vm209, %v189, %v225
  %v242 = vsel %vm210, %v163, %v226
  %v243 = vsel %vm211, %v192, %v227
  %v244 = vsel %vm212, %v165, %v228
  %v245 = vsel %vm213, %v194, %v229
  %v246 = vsel %vm214, %v168, %v230
  %v247 = vsel %vm215, %v197, %v231
  %v248 = vsel %vm216, %v170, %v232
  %v249 = vsel %vm217, %v199, %v233
  %v250 = vsel %vm218, %v173, %v234
  %v251 = vsel %vm219, %v202, %v235
  %v252 = vsel %vm220, %v175, %v236
  %v253 = vsel %vm221, %v204, %v237
  %v254 = vpack.c.bf16 %v240, %v238
  %v255 = vpack.c.bf16 %v241, %v239
  %v256 = vpack.c.bf16 %v244, %v242
  %v257 = vpack.c.bf16 %v245, %v243
  %v258 = vpack.c.bf16 %v248, %v246
  %v259 = vpack.c.bf16 %v249, %v247
  %v260 = vpack.c.bf16 %v252, %v250
  %v261 = vpack.c.bf16 %v253, %v251
  %v278 = vunpack.c.l.b16 %v35
  %v279 = vunpack.c.l.b16 %v36
  %v280 = vunpack.c.l.b16 %v37
  %v281 = vunpack.c.l.b16 %v38
  %v282 = vunpack.c.l.b16 %v39
  %v283 = vunpack.c.l.b16 %v40
  %v284 = vunpack.c.l.b16 %v41
  %v285 = vunpack.c.l.b16 %v42
  %v286 = vunpack.c.l.b16 %v43
  %v287 = vunpack.c.l.b16 %v44
  %v288 = vunpack.c.l.b16 %v45
  %v289 = vunpack.c.l.b16 %v46
  %v290 = vunpack.c.l.b16 %v47
  %v291 = vunpack.c.l.b16 %v48
  %v292 = vunpack.c.l.b16 %v49
  %v293 = vunpack.c.l.b16 %v50
  %v294 = vpack.c.b16 %v279, %v278
  %v295 = vpack.c.b16 %v281, %v280
  %v296 = vpack.c.b16 %v283, %v282
  %v297 = vpack.c.b16 %v285, %v284
  %v298 = vpack.c.b16 %v287, %v286
  %v299 = vpack.c.b16 %v289, %v288
  %v300 = vpack.c.b16 %v291, %v290
  %v301 = vpack.c.b16 %v293, %v292
  %vm302 = vcmask 523264
  %v304 = vsel %vm302, %v294, 0
  %v307 = vsel %vm302, %v295, 0
  %v310 = vsel %vm302, %v296, 0
  %v313 = vsel %vm302, %v297, 0
  %v316 = vsel %vm302, %v298, 0
  %v319 = vsel %vm302, %v299, 0
  %v322 = vsel %vm302, %v300, 0
  %v325 = vsel %vm302, %v301, 0
  %327 = vmatpush.bf16.msra.mxu0 0
  %328 = vmatpush.bf16.msra.mxu0 0
  %329 = vmatpush.bf16.msra.mxu0 0
  %330 = vmatpush.bf16.msra.mxu0 0
  %331 = vmatpush.bf16.msra.mxu0 %v260
  %332 = vmatpush.bf16.msra.mxu0 %v258
  %333 = vmatpush.bf16.msra.mxu0 %v256
  %334 = vmatpush.bf16.msra.mxu0 %v254
  %335 = vmatmul.bf16.gmra.mxu0 %v304
  %v336 = vpop.f32.mrf.mxu0
  %v337 = vadd.f32 0.0, %v336
  %v338 = vpop.f32.mrf.mxu0
  %v339 = vadd.f32 0.0, %v338
  %340 = vmatmul.bf16.gmra.mxu0 %v307
  %v341 = vpop.f32.mrf.mxu0
  %v342 = vadd.f32 0.0, %v341
  %v343 = vpop.f32.mrf.mxu0
  %v344 = vadd.f32 0.0, %v343
  %345 = vmatmul.bf16.gmra.mxu0 %v310
  %v346 = vpop.f32.mrf.mxu0
  %v347 = vadd.f32 0.0, %v346
  %v348 = vpop.f32.mrf.mxu0
  %v349 = vadd.f32 0.0, %v348
  %350 = vmatmul.bf16.gmra.mxu0 %v313
  %v351 = vpop.f32.mrf.mxu0
  %v352 = vadd.f32 0.0, %v351
  %v353 = vpop.f32.mrf.mxu0
  %v354 = vadd.f32 0.0, %v353
  %355 = vmatmul.bf16.gmra.mxu0 %v316
  %v356 = vpop.f32.mrf.mxu0
  %v357 = vadd.f32 0.0, %v356
  %v358 = vpop.f32.mrf.mxu0
  %v359 = vadd.f32 0.0, %v358
  %360 = vmatmul.bf16.gmra.mxu0 %v319
  %v361 = vpop.f32.mrf.mxu0
  %v362 = vadd.f32 0.0, %v361
  %v363 = vpop.f32.mrf.mxu0
  %v364 = vadd.f32 0.0, %v363
  %365 = vmatmul.bf16.gmra.mxu0 %v322
  %v366 = vpop.f32.mrf.mxu0
  %v367 = vadd.f32 0.0, %v366
  %v368 = vpop.f32.mrf.mxu0
  %v369 = vadd.f32 0.0, %v368
  %370 = vmatmul.bf16.gmra.mxu0 %v325
  %v371 = vpop.f32.mrf.mxu0
  %v372 = vadd.f32 0.0, %v371
  %v373 = vpop.f32.mrf.mxu0
  %v374 = vadd.f32 0.0, %v373
  %375 = vdwg.mxu0
  %376 = vmatpush.bf16.msra.mxu0 0
  %377 = vmatpush.bf16.msra.mxu0 0
  %378 = vmatpush.bf16.msra.mxu0 0
  %379 = vmatpush.bf16.msra.mxu0 0
  %380 = vmatpush.bf16.msra.mxu0 %v261
  %381 = vmatpush.bf16.msra.mxu0 %v259
  %382 = vmatpush.bf16.msra.mxu0 %v257
  %383 = vmatpush.bf16.msra.mxu0 %v255
  %384 = vmatmul.bf16.gmra.mxu0 %v304
  %v385 = vpop.f32.mrf.mxu0
  %v386 = vadd.f32 0.0, %v385
  %v387 = vpop.f32.mrf.mxu0
  %v388 = vadd.f32 0.0, %v387
  %389 = vmatmul.bf16.gmra.mxu0 %v307
  %v390 = vpop.f32.mrf.mxu0
  %v391 = vadd.f32 0.0, %v390
  %v392 = vpop.f32.mrf.mxu0
  %v393 = vadd.f32 0.0, %v392
  %394 = vmatmul.bf16.gmra.mxu0 %v310
  %v395 = vpop.f32.mrf.mxu0
  %v396 = vadd.f32 0.0, %v395
  %v397 = vpop.f32.mrf.mxu0
  %v398 = vadd.f32 0.0, %v397
  %399 = vmatmul.bf16.gmra.mxu0 %v313
  %v400 = vpop.f32.mrf.mxu0
  %v401 = vadd.f32 0.0, %v400
  %v402 = vpop.f32.mrf.mxu0
  %v403 = vadd.f32 0.0, %v402
  %404 = vmatmul.bf16.gmra.mxu0 %v316
  %v405 = vpop.f32.mrf.mxu0
  %v406 = vadd.f32 0.0, %v405
  %v407 = vpop.f32.mrf.mxu0
  %v408 = vadd.f32 0.0, %v407
  %409 = vmatmul.bf16.gmra.mxu0 %v319
  %v410 = vpop.f32.mrf.mxu0
  %v411 = vadd.f32 0.0, %v410
  %v412 = vpop.f32.mrf.mxu0
  %v413 = vadd.f32 0.0, %v412
  %414 = vmatmul.bf16.gmra.mxu0 %v322
  %v415 = vpop.f32.mrf.mxu0
  %v416 = vadd.f32 0.0, %v415
  %v417 = vpop.f32.mrf.mxu0
  %v418 = vadd.f32 0.0, %v417
  %419 = vmatmul.bf16.gmra.mxu0 %v325
  %v420 = vpop.f32.mrf.mxu0
  %v421 = vadd.f32 0.0, %v420
  %v422 = vpop.f32.mrf.mxu0
  %v423 = vadd.f32 0.0, %v422
  %424 = vdwg.mxu0
  %425 = vst [vmem:[#allocation2] sm:$0xff] %v337
  %426 = vst [vmem:[#allocation2 + $0x8] sm:$0xff] %v386
  %427 = vst [vmem:[#allocation2 + $0x20] sm:$0xff] %v339
  %428 = vst [vmem:[#allocation2 + $0x28] sm:$0xff] %v388
  %429 = vst [vmem:[#allocation2 + $0x40] sm:$0xff] %v342
  %430 = vst [vmem:[#allocation2 + $0x48] sm:$0xff] %v391
  %431 = vst [vmem:[#allocation2 + $0x60] sm:$0xff] %v344
  %432 = vst [vmem:[#allocation2 + $0x68] sm:$0xff] %v393
  %433 = vst [vmem:[#allocation2 + $0x80] sm:$0xff] %v347
  %434 = vst [vmem:[#allocation2 + $0x88] sm:$0xff] %v396
  %435 = vst [vmem:[#allocation2 + $0xa0] sm:$0xff] %v349
  %436 = vst [vmem:[#allocation2 + $0xa8] sm:$0xff] %v398
  %437 = vst [vmem:[#allocation2 + $0xc0] sm:$0xff] %v352
  %438 = vst [vmem:[#allocation2 + $0xc8] sm:$0xff] %v401
  %439 = vst [vmem:[#allocation2 + $0xe0] sm:$0xff] %v354
  %440 = vst [vmem:[#allocation2 + $0xe8] sm:$0xff] %v403
  %441 = vst [vmem:[#allocation2 + $0x100] sm:$0xff] %v357
  %442 = vst [vmem:[#allocation2 + $0x108] sm:$0xff] %v406
  %443 = vst [vmem:[#allocation2 + $0x120] sm:$0xff] %v359
  %444 = vst [vmem:[#allocation2 + $0x128] sm:$0xff] %v408
  %445 = vst [vmem:[#allocation2 + $0x140] sm:$0xff] %v362
  %446 = vst [vmem:[#allocation2 + $0x148] sm:$0xff] %v411
  %447 = vst [vmem:[#allocation2 + $0x160] sm:$0xff] %v364
  %448 = vst [vmem:[#allocation2 + $0x168] sm:$0xff] %v413
  %449 = vst [vmem:[#allocation2 + $0x180] sm:$0xff] %v367
  %450 = vst [vmem:[#allocation2 + $0x188] sm:$0xff] %v416
  %451 = vst [vmem:[#allocation2 + $0x1a0] sm:$0xff] %v369
  %452 = vst [vmem:[#allocation2 + $0x1a8] sm:$0xff] %v418
  %453 = vst [vmem:[#allocation2 + $0x1c0] sm:$0xff] %v372
  %454 = vst [vmem:[#allocation2 + $0x1c8] sm:$0xff] %v421
  %455 = vst [vmem:[#allocation2 + $0x1e0] sm:$0xff] %v374
  %456 = vst [vmem:[#allocation2 + $0x1e8] sm:$0xff] %v423
  %s457 = scalar_lea.vmem %s0, 8
  %v458 = vld [vmem:[%s457] sm:$0xff]
  %460 = vst [vmem:[#allocation1] ss:$2 sm:$0xff] %v458
  %v461 = vld.sshfl [vmem:[#allocation1] sm:$0xff pattern:$0x75316420]
  %v462 = vld.sshfl [vmem:[#allocation1 + $0x8] sm:$0xff pattern:$0x75316420]
  %v465 = vpack.c.bf16 %v461, %v461
  %v466 = vpack.c.bf16 %v462, %v462
  %v468 = vsel %vm141, %v465, 0
  %v471 = vsel %vm141, %v466, 0
  %473 = vmatpush.bf16.msra.mxu0 0
  %474 = vmatpush.bf16.msra.mxu0 0
  %475 = vmatpush.bf16.msra.mxu0 0
  %476 = vmatpush.bf16.msra.mxu0 0
  %477 = vmatpush.bf16.msra.mxu0 0
  %478 = vmatpush.bf16.msra.mxu0 0
  %479 = vmatpush.bf16.msra.mxu0 0
  %480 = vmatpush.bf16.msra.mxu0 %v468
  %481 = vmatmul.bf16.gmra.mxu0 %v130
  %v482 = vpop.f32.mrf.mxu0
  %v483 = vadd.f32 %v71, %v482
  %v484 = vpop.f32.mrf.mxu0
  %v485 = vadd.f32 %v76, %v484
  %486 = vmatmul.bf16.gmra.mxu0 %v133
  %v487 = vpop.f32.mrf.mxu0
  %v488 = vadd.f32 %v81, %v487
  %v489 = vpop.f32.mrf.mxu0
  %v490 = vadd.f32 %v86, %v489
  %491 = vmatmul.bf16.gmra.mxu0 %v136
  %v492 = vpop.f32.mrf.mxu0
  %v493 = vadd.f32 %v91, %v492
  %v494 = vpop.f32.mrf.mxu0
  %v495 = vadd.f32 %v96, %v494
  %496 = vmatmul.bf16.gmra.mxu0 %v139
  %v497 = vpop.f32.mrf.mxu0
  %v498 = vadd.f32 %v101, %v497
  %v499 = vpop.f32.mrf.mxu0
  %v500 = vadd.f32 %v106, %v499
  %501 = vdwg.mxu0
  %502 = vmatpush.bf16.msra.mxu0 0
  %503 = vmatpush.bf16.msra.mxu0 0
  %504 = vmatpush.bf16.msra.mxu0 0
  %505 = vmatpush.bf16.msra.mxu0 0
  %506 = vmatpush.bf16.msra.mxu0 0
  %507 = vmatpush.bf16.msra.mxu0 0
  %508 = vmatpush.bf16.msra.mxu0 0
  %509 = vmatpush.bf16.msra.mxu0 %v471
  %510 = vmatmul.bf16.gmra.mxu0 %v130
  %v511 = vpop.f32.mrf.mxu0
  %v512 = vadd.f32 %v71, %v511
  %v513 = vpop.f32.mrf.mxu0
  %v514 = vadd.f32 %v76, %v513
  %515 = vmatmul.bf16.gmra.mxu0 %v133
  %v516 = vpop.f32.mrf.mxu0
  %v517 = vadd.f32 %v81, %v516
  %v518 = vpop.f32.mrf.mxu0
  %v519 = vadd.f32 %v86, %v518
  %520 = vmatmul.bf16.gmra.mxu0 %v136
  %v521 = vpop.f32.mrf.mxu0
  %v522 = vadd.f32 %v91, %v521
  %v523 = vpop.f32.mrf.mxu0
  %v524 = vadd.f32 %v96, %v523
  %525 = vmatmul.bf16.gmra.mxu0 %v139
  %v526 = vpop.f32.mrf.mxu0
  %v527 = vadd.f32 %v101, %v526
  %v528 = vpop.f32.mrf.mxu0
  %v529 = vadd.f32 %v106, %v528
  %530 = vdwg.mxu0
  %vm531 = vcmp.ge.f32.partialorder %v483, 0.0
  %vm532 = vcmp.ge.f32.partialorder %v512, 0.0
  %vm533 = vcmp.ge.f32.partialorder %v485, 0.0
  %vm534 = vcmp.ge.f32.partialorder %v514, 0.0
  %vm535 = vcmp.ge.f32.partialorder %v488, 0.0
  %vm536 = vcmp.ge.f32.partialorder %v517, 0.0
  %vm537 = vcmp.ge.f32.partialorder %v490, 0.0
  %vm538 = vcmp.ge.f32.partialorder %v519, 0.0
  %vm539 = vcmp.ge.f32.partialorder %v493, 0.0
  %vm540 = vcmp.ge.f32.partialorder %v522, 0.0
  %vm541 = vcmp.ge.f32.partialorder %v495, 0.0
  %vm542 = vcmp.ge.f32.partialorder %v524, 0.0
  %vm543 = vcmp.ge.f32.partialorder %v498, 0.0
  %vm544 = vcmp.ge.f32.partialorder %v527, 0.0
  %vm545 = vcmp.ge.f32.partialorder %v500, 0.0
  %vm546 = vcmp.ge.f32.partialorder %v529, 0.0
  %v547 = vmul.f32 %v483, 0.2
  %v548 = vmul.f32 %v512, 0.2
  %v549 = vmul.f32 %v485, 0.2
  %v550 = vmul.f32 %v514, 0.2
  %v551 = vmul.f32 %v488, 0.2
  %v552 = vmul.f32 %v517, 0.2
  %v553 = vmul.f32 %v490, 0.2
  %v554 = vmul.f32 %v519, 0.2
  %v555 = vmul.f32 %v493, 0.2
  %v556 = vmul.f32 %v522, 0.2
  %v557 = vmul.f32 %v495, 0.2
  %v558 = vmul.f32 %v524, 0.2
  %v559 = vmul.f32 %v498, 0.2
  %v560 = vmul.f32 %v527, 0.2
  %v561 = vmul.f32 %v500, 0.2
  %v562 = vmul.f32 %v529, 0.2
  %v563 = vsel %vm531, %v483, %v547
  %v564 = vsel %vm532, %v512, %v548
  %v565 = vsel %vm533, %v485, %v549
  %v566 = vsel %vm534, %v514, %v550
  %v567 = vsel %vm535, %v488, %v551
  %v568 = vsel %vm536, %v517, %v552
  %v569 = vsel %vm537, %v490, %v553
  %v570 = vsel %vm538, %v519, %v554
  %v571 = vsel %vm539, %v493, %v555
  %v572 = vsel %vm540, %v522, %v556
  %v573 = vsel %vm541, %v495, %v557
  %v574 = vsel %vm542, %v524, %v558
  %v575 = vsel %vm543, %v498, %v559
  %v576 = vsel %vm544, %v527, %v560
  %v577 = vsel %vm545, %v500, %v561
  %v578 = vsel %vm546, %v529, %v562
  %v579 = vpack.c.bf16 %v565, %v563
  %v580 = vpack.c.bf16 %v566, %v564
  %v581 = vpack.c.bf16 %v569, %v567
  %v582 = vpack.c.bf16 %v570, %v568
  %v583 = vpack.c.bf16 %v573, %v571
  %v584 = vpack.c.bf16 %v574, %v572
  %v585 = vpack.c.bf16 %v577, %v575
  %v586 = vpack.c.bf16 %v578, %v576
  %587 = vmatpush.bf16.msra.mxu0 0
  %588 = vmatpush.bf16.msra.mxu0 0
  %589 = vmatpush.bf16.msra.mxu0 0
  %590 = vmatpush.bf16.msra.mxu0 0
  %591 = vmatpush.bf16.msra.mxu0 %v585
  %592 = vmatpush.bf16.msra.mxu0 %v583
  %593 = vmatpush.bf16.msra.mxu0 %v581
  %594 = vmatpush.bf16.msra.mxu0 %v579
  %595 = vmatmul.bf16.gmra.mxu0 %v304
  %v596 = vpop.f32.mrf.mxu0
  %v597 = vadd.f32 0.0, %v596
  %v598 = vpop.f32.mrf.mxu0
  %v599 = vadd.f32 0.0, %v598
  %600 = vmatmul.bf16.gmra.mxu0 %v307
  %v601 = vpop.f32.mrf.mxu0
  %v602 = vadd.f32 0.0, %v601
  %v603 = vpop.f32.mrf.mxu0
  %v604 = vadd.f32 0.0, %v603
  %605 = vmatmul.bf16.gmra.mxu0 %v310
  %v606 = vpop.f32.mrf.mxu0
  %v607 = vadd.f32 0.0, %v606
  %v608 = vpop.f32.mrf.mxu0
  %v609 = vadd.f32 0.0, %v608
  %610 = vmatmul.bf16.gmra.mxu0 %v313
  %v611 = vpop.f32.mrf.mxu0
  %v612 = vadd.f32 0.0, %v611
  %v613 = vpop.f32.mrf.mxu0
  %v614 = vadd.f32 0.0, %v613
  %615 = vmatmul.bf16.gmra.mxu0 %v316
  %v616 = vpop.f32.mrf.mxu0
  %v617 = vadd.f32 0.0, %v616
  %v618 = vpop.f32.mrf.mxu0
  %v619 = vadd.f32 0.0, %v618
  %620 = vmatmul.bf16.gmra.mxu0 %v319
  %v621 = vpop.f32.mrf.mxu0
  %v622 = vadd.f32 0.0, %v621
  %v623 = vpop.f32.mrf.mxu0
  %v624 = vadd.f32 0.0, %v623
  %625 = vmatmul.bf16.gmra.mxu0 %v322
  %v626 = vpop.f32.mrf.mxu0
  %v627 = vadd.f32 0.0, %v626
  %v628 = vpop.f32.mrf.mxu0
  %v629 = vadd.f32 0.0, %v628
  %630 = vmatmul.bf16.gmra.mxu0 %v325
  %v631 = vpop.f32.mrf.mxu0
  %v632 = vadd.f32 0.0, %v631
  %v633 = vpop.f32.mrf.mxu0
  %v634 = vadd.f32 0.0, %v633
  %635 = vdwg.mxu0
  %636 = vmatpush.bf16.msra.mxu0 0
  %637 = vmatpush.bf16.msra.mxu0 0
  %638 = vmatpush.bf16.msra.mxu0 0
  %639 = vmatpush.bf16.msra.mxu0 0
  %640 = vmatpush.bf16.msra.mxu0 %v586
  %641 = vmatpush.bf16.msra.mxu0 %v584
  %642 = vmatpush.bf16.msra.mxu0 %v582
  %643 = vmatpush.bf16.msra.mxu0 %v580
  %644 = vmatmul.bf16.gmra.mxu0 %v304
  %v645 = vpop.f32.mrf.mxu0
  %v646 = vadd.f32 0.0, %v645
  %v647 = vpop.f32.mrf.mxu0
  %v648 = vadd.f32 0.0, %v647
  %649 = vmatmul.bf16.gmra.mxu0 %v307
  %v650 = vpop.f32.mrf.mxu0
  %v651 = vadd.f32 0.0, %v650
  %v652 = vpop.f32.mrf.mxu0
  %v653 = vadd.f32 0.0, %v652
  %654 = vmatmul.bf16.gmra.mxu0 %v310
  %v655 = vpop.f32.mrf.mxu0
  %v656 = vadd.f32 0.0, %v655
  %v657 = vpop.f32.mrf.mxu0
  %v658 = vadd.f32 0.0, %v657
  %659 = vmatmul.bf16.gmra.mxu0 %v313
  %v660 = vpop.f32.mrf.mxu0
  %v661 = vadd.f32 0.0, %v660
  %v662 = vpop.f32.mrf.mxu0
  %v663 = vadd.f32 0.0, %v662
  %664 = vmatmul.bf16.gmra.mxu0 %v316
  %v665 = vpop.f32.mrf.mxu0
  %v666 = vadd.f32 0.0, %v665
  %v667 = vpop.f32.mrf.mxu0
  %v668 = vadd.f32 0.0, %v667
  %669 = vmatmul.bf16.gmra.mxu0 %v319
  %v670 = vpop.f32.mrf.mxu0
  %v671 = vadd.f32 0.0, %v670
  %v672 = vpop.f32.mrf.mxu0
  %v673 = vadd.f32 0.0, %v672
  %674 = vmatmul.bf16.gmra.mxu0 %v322
  %v675 = vpop.f32.mrf.mxu0
  %v676 = vadd.f32 0.0, %v675
  %v677 = vpop.f32.mrf.mxu0
  %v678 = vadd.f32 0.0, %v677
  %679 = vmatmul.bf16.gmra.mxu0 %v325
  %v680 = vpop.f32.mrf.mxu0
  %v681 = vadd.f32 0.0, %v680
  %v682 = vpop.f32.mrf.mxu0
  %v683 = vadd.f32 0.0, %v682
  %684 = vdwg.mxu0
  %685 = vst [vmem:[#allocation2 + $0x10] sm:$0xff] %v597
  %686 = vst [vmem:[#allocation2 + $0x18] sm:$0xff] %v646
  %687 = vst [vmem:[#allocation2 + $0x30] sm:$0xff] %v599
  %688 = vst [vmem:[#allocation2 + $0x38] sm:$0xff] %v648
  %689 = vst [vmem:[#allocation2 + $0x50] sm:$0xff] %v602
  %690 = vst [vmem:[#allocation2 + $0x58] sm:$0xff] %v651
  %691 = vst [vmem:[#allocation2 + $0x70] sm:$0xff] %v604
  %692 = vst [vmem:[#allocation2 + $0x78] sm:$0xff] %v653
  %693 = vst [vmem:[#allocation2 + $0x90] sm:$0xff] %v607
  %694 = vst [vmem:[#allocation2 + $0x98] sm:$0xff] %v656
  %695 = vst [vmem:[#allocation2 + $0xb0] sm:$0xff] %v609
  %696 = vst [vmem:[#allocation2 + $0xb8] sm:$0xff] %v658
  %697 = vst [vmem:[#allocation2 + $0xd0] sm:$0xff] %v612
  %698 = vst [vmem:[#allocation2 + $0xd8] sm:$0xff] %v661
  %699 = vst [vmem:[#allocation2 + $0xf0] sm:$0xff] %v614
  %700 = vst [vmem:[#allocation2 + $0xf8] sm:$0xff] %v663
  %701 = vst [vmem:[#allocation2 + $0x110] sm:$0xff] %v617
  %702 = vst [vmem:[#allocation2 + $0x118] sm:$0xff] %v666
  %703 = vst [vmem:[#allocation2 + $0x130] sm:$0xff] %v619
  %704 = vst [vmem:[#allocation2 + $0x138] sm:$0xff] %v668
  %705 = vst [vmem:[#allocation2 + $0x150] sm:$0xff] %v622
  %706 = vst [vmem:[#allocation2 + $0x158] sm:$0xff] %v671
  %707 = vst [vmem:[#allocation2 + $0x170] sm:$0xff] %v624
  %708 = vst [vmem:[#allocation2 + $0x178] sm:$0xff] %v673
  %709 = vst [vmem:[#allocation2 + $0x190] sm:$0xff] %v627
  %710 = vst [vmem:[#allocation2 + $0x198] sm:$0xff] %v676
  %711 = vst [vmem:[#allocation2 + $0x1b0] sm:$0xff] %v629
  %712 = vst [vmem:[#allocation2 + $0x1b8] sm:$0xff] %v678
  %713 = vst [vmem:[#allocation2 + $0x1d0] sm:$0xff] %v632
  %714 = vst [vmem:[#allocation2 + $0x1d8] sm:$0xff] %v681
  %715 = vst [vmem:[#allocation2 + $0x1f0] sm:$0xff] %v634
  %716 = vst [vmem:[#allocation2 + $0x1f8] sm:$0xff] %v683
  %v717 = vld [vmem:[#allocation2] sm:$0xff]
  %v718 = vld [vmem:[#allocation2 + $0x8] sm:$0xff]
  %v719 = vld [vmem:[#allocation2 + $0x10] sm:$0xff]
  %v720 = vld [vmem:[#allocation2 + $0x18] sm:$0xff]
  %v721 = vld [vmem:[#allocation2 + $0x20] sm:$0xff]
  %v722 = vld [vmem:[#allocation2 + $0x28] sm:$0xff]
  %v723 = vld [vmem:[#allocation2 + $0x30] sm:$0xff]
  %v724 = vld [vmem:[#allocation2 + $0x38] sm:$0xff]
  %v725 = vld [vmem:[#allocation2 + $0x40] sm:$0xff]
  %v726 = vld [vmem:[#allocation2 + $0x48] sm:$0xff]
  %v727 = vld [vmem:[#allocation2 + $0x50] sm:$0xff]
  %v728 = vld [vmem:[#allocation2 + $0x58] sm:$0xff]
  %v729 = vld [vmem:[#allocation2 + $0x60] sm:$0xff]
  %v730 = vld [vmem:[#allocation2 + $0x68] sm:$0xff]
  %v731 = vld [vmem:[#allocation2 + $0x70] sm:$0xff]
  %v732 = vld [vmem:[#allocation2 + $0x78] sm:$0xff]
  %v733 = vld [vmem:[#allocation2 + $0x80] sm:$0xff]
  %v734 = vld [vmem:[#allocation2 + $0x88] sm:$0xff]
  %v735 = vld [vmem:[#allocation2 + $0x90] sm:$0xff]
  %v736 = vld [vmem:[#allocation2 + $0x98] sm:$0xff]
  %v737 = vld [vmem:[#allocation2 + $0xa0] sm:$0xff]
  %v738 = vld [vmem:[#allocation2 + $0xa8] sm:$0xff]
  %v739 = vld [vmem:[#allocation2 + $0xb0] sm:$0xff]
  %v740 = vld [vmem:[#allocation2 + $0xb8] sm:$0xff]
  %v741 = vld [vmem:[#allocation2 + $0xc0] sm:$0xff]
  %v742 = vld [vmem:[#allocation2 + $0xc8] sm:$0xff]
  %v743 = vld [vmem:[#allocation2 + $0xd0] sm:$0xff]
  %v744 = vld [vmem:[#allocation2 + $0xd8] sm:$0xff]
  %v745 = vld [vmem:[#allocation2 + $0xe0] sm:$0xff]
  %v746 = vld [vmem:[#allocation2 + $0xe8] sm:$0xff]
  %v747 = vld [vmem:[#allocation2 + $0xf0] sm:$0xff]
  %v748 = vld [vmem:[#allocation2 + $0xf8] sm:$0xff]
  %v749 = vld [vmem:[#allocation2 + $0x100] sm:$0xff]
  %v750 = vld [vmem:[#allocation2 + $0x108] sm:$0xff]
  %v751 = vld [vmem:[#allocation2 + $0x110] sm:$0xff]
  %v752 = vld [vmem:[#allocation2 + $0x118] sm:$0xff]
  %v753 = vld [vmem:[#allocation2 + $0x120] sm:$0xff]
  %v754 = vld [vmem:[#allocation2 + $0x128] sm:$0xff]
  %v755 = vld [vmem:[#allocation2 + $0x130] sm:$0xff]
  %v756 = vld [vmem:[#allocation2 + $0x138] sm:$0xff]
  %v757 = vld [vmem:[#allocation2 + $0x140] sm:$0xff]
  %v758 = vld [vmem:[#allocation2 + $0x148] sm:$0xff]
  %v759 = vld [vmem:[#allocation2 + $0x150] sm:$0xff]
  %v760 = vld [vmem:[#allocation2 + $0x158] sm:$0xff]
  %v761 = vld [vmem:[#allocation2 + $0x160] sm:$0xff]
  %v762 = vld [vmem:[#allocation2 + $0x168] sm:$0xff]
  %v763 = vld [vmem:[#allocation2 + $0x170] sm:$0xff]
  %v764 = vld [vmem:[#allocation2 + $0x178] sm:$0xff]
  %v765 = vld [vmem:[#allocation2 + $0x180] sm:$0xff]
  %v766 = vld [vmem:[#allocation2 + $0x188] sm:$0xff]
  %v767 = vld [vmem:[#allocation2 + $0x190] sm:$0xff]
  %v768 = vld [vmem:[#allocation2 + $0x198] sm:$0xff]
  %v769 = vld [vmem:[#allocation2 + $0x1a0] sm:$0xff]
  %v770 = vld [vmem:[#allocation2 + $0x1a8] sm:$0xff]
  %v771 = vld [vmem:[#allocation2 + $0x1b0] sm:$0xff]
  %v772 = vld [vmem:[#allocation2 + $0x1b8] sm:$0xff]
  %v773 = vld [vmem:[#allocation2 + $0x1c0] sm:$0xff]
  %v774 = vld [vmem:[#allocation2 + $0x1c8] sm:$0xff]
  %v775 = vld [vmem:[#allocation2 + $0x1d0] sm:$0xff]
  %v776 = vld [vmem:[#allocation2 + $0x1d8] sm:$0xff]
  %v777 = vld [vmem:[#allocation2 + $0x1e0] sm:$0xff]
  %v778 = vld [vmem:[#allocation2 + $0x1e8] sm:$0xff]
  %v779 = vld [vmem:[#allocation2 + $0x1f0] sm:$0xff]
  %v780 = vld [vmem:[#allocation2 + $0x1f8] sm:$0xff]
  %v781 = vadd.f32 %v717, %v718
  %v782 = vadd.f32 %v781, %v719
  %v783 = vadd.f32 %v782, %v720
  %784 = vadd.xlane.f32.xlu0 %v783
  %v785 = vpop.xlane.xlu0 %784
  %v786 = vadd.f32 %v721, %v722
  %v787 = vadd.f32 %v786, %v723
  %v788 = vadd.f32 %v787, %v724
  %789 = vadd.xlane.f32.xlu0 %v788
  %v790 = vpop.xlane.xlu0 %789
  %v791 = vadd.f32 %v725, %v726
  %v792 = vadd.f32 %v791, %v727
  %v793 = vadd.f32 %v792, %v728
  %794 = vadd.xlane.f32.xlu0 %v793
  %v795 = vpop.xlane.xlu0 %794
  %v796 = vadd.f32 %v729, %v730
  %v797 = vadd.f32 %v796, %v731
  %v798 = vadd.f32 %v797, %v732
  %799 = vadd.xlane.f32.xlu0 %v798
  %v800 = vpop.xlane.xlu0 %799
  %v801 = vadd.f32 %v733, %v734
  %v802 = vadd.f32 %v801, %v735
  %v803 = vadd.f32 %v802, %v736
  %804 = vadd.xlane.f32.xlu0 %v803
  %v805 = vpop.xlane.xlu0 %804
  %v806 = vadd.f32 %v737, %v738
  %v807 = vadd.f32 %v806, %v739
  %v808 = vadd.f32 %v807, %v740
  %809 = vadd.xlane.f32.xlu0 %v808
  %v810 = vpop.xlane.xlu0 %809
  %v811 = vadd.f32 %v741, %v742
  %v812 = vadd.f32 %v811, %v743
  %v813 = vadd.f32 %v812, %v744
  %814 = vadd.xlane.f32.xlu0 %v813
  %v815 = vpop.xlane.xlu0 %814
  %v816 = vadd.f32 %v745, %v746
  %v817 = vadd.f32 %v816, %v747
  %v818 = vadd.f32 %v817, %v748
  %819 = vadd.xlane.f32.xlu0 %v818
  %v820 = vpop.xlane.xlu0 %819
  %v821 = vadd.f32 %v749, %v750
  %v822 = vadd.f32 %v821, %v751
  %v823 = vadd.f32 %v822, %v752
  %824 = vadd.xlane.f32.xlu0 %v823
  %v825 = vpop.xlane.xlu0 %824
  %v826 = vadd.f32 %v753, %v754
  %v827 = vadd.f32 %v826, %v755
  %v828 = vadd.f32 %v827, %v756
  %829 = vadd.xlane.f32.xlu0 %v828
  %v830 = vpop.xlane.xlu0 %829
  %v831 = vadd.f32 %v757, %v758
  %v832 = vadd.f32 %v831, %v759
  %v833 = vadd.f32 %v832, %v760
  %834 = vadd.xlane.f32.xlu0 %v833
  %v835 = vpop.xlane.xlu0 %834
  %v836 = vadd.f32 %v761, %v762
  %v837 = vadd.f32 %v836, %v763
  %v838 = vadd.f32 %v837, %v764
  %839 = vadd.xlane.f32.xlu0 %v838
  %v840 = vpop.xlane.xlu0 %839
  %v841 = vadd.f32 %v765, %v766
  %v842 = vadd.f32 %v841, %v767
  %v843 = vadd.f32 %v842, %v768
  %844 = vadd.xlane.f32.xlu0 %v843
  %v845 = vpop.xlane.xlu0 %844
  %v846 = vadd.f32 %v769, %v770
  %v847 = vadd.f32 %v846, %v771
  %v848 = vadd.f32 %v847, %v772
  %849 = vadd.xlane.f32.xlu0 %v848
  %v850 = vpop.xlane.xlu0 %849
  %v851 = vadd.f32 %v773, %v774
  %v852 = vadd.f32 %v851, %v775
  %v853 = vadd.f32 %v852, %v776
  %854 = vadd.xlane.f32.xlu0 %v853
  %v855 = vpop.xlane.xlu0 %854
  %v856 = vadd.f32 %v777, %v778
  %v857 = vadd.f32 %v856, %v779
  %v858 = vadd.f32 %v857, %v780
  %859 = vadd.xlane.f32.xlu0 %v858
  %v860 = vpop.xlane.xlu0 %859
  %v861 = vmul.f32 %v785, 0.001953125
  %v862 = vmul.f32 %v790, 0.001953125
  %v863 = vmul.f32 %v795, 0.001953125
  %v864 = vmul.f32 %v800, 0.001953125
  %v865 = vmul.f32 %v805, 0.001953125
  %v866 = vmul.f32 %v810, 0.001953125
  %v867 = vmul.f32 %v815, 0.001953125
  %v868 = vmul.f32 %v820, 0.001953125
  %v869 = vmul.f32 %v825, 0.001953125
  %v870 = vmul.f32 %v830, 0.001953125
  %v871 = vmul.f32 %v835, 0.001953125
  %v872 = vmul.f32 %v840, 0.001953125
  %v873 = vmul.f32 %v845, 0.001953125
  %v874 = vmul.f32 %v850, 0.001953125
  %v875 = vmul.f32 %v855, 0.001953125
  %v876 = vmul.f32 %v860, 0.001953125
  %v877 = vmul.f32 %v717, %v717
  %v878 = vmul.f32 %v718, %v718
  %v879 = vmul.f32 %v719, %v719
  %v880 = vmul.f32 %v720, %v720
  %v881 = vmul.f32 %v721, %v721
  %v882 = vmul.f32 %v722, %v722
  %v883 = vmul.f32 %v723, %v723
  %v884 = vmul.f32 %v724, %v724
  %v885 = vmul.f32 %v725, %v725
  %v886 = vmul.f32 %v726, %v726
  %v887 = vmul.f32 %v727, %v727
  %v888 = vmul.f32 %v728, %v728
  %v889 = vmul.f32 %v729, %v729
  %v890 = vmul.f32 %v730, %v730
  %v891 = vmul.f32 %v731, %v731
  %v892 = vmul.f32 %v732, %v732
  %v893 = vmul.f32 %v733, %v733
  %v894 = vmul.f32 %v734, %v734
  %v895 = vmul.f32 %v735, %v735
  %v896 = vmul.f32 %v736, %v736
  %v897 = vmul.f32 %v737, %v737
  %v898 = vmul.f32 %v738, %v738
  %v899 = vmul.f32 %v739, %v739
  %v900 = vmul.f32 %v740, %v740
  %v901 = vmul.f32 %v741, %v741
  %v902 = vmul.f32 %v742, %v742
  %v903 = vmul.f32 %v743, %v743
  %v904 = vmul.f32 %v744, %v744
  %v905 = vmul.f32 %v745, %v745
  %v906 = vmul.f32 %v746, %v746
  %v907 = vmul.f32 %v747, %v747
  %v908 = vmul.f32 %v748, %v748
  %v909 = vmul.f32 %v749, %v749
  %v910 = vmul.f32 %v750, %v750
  %v911 = vmul.f32 %v751, %v751
  %v912 = vmul.f32 %v752, %v752
  %v913 = vmul.f32 %v753, %v753
  %v914 = vmul.f32 %v754, %v754
  %v915 = vmul.f32 %v755, %v755
  %v916 = vmul.f32 %v756, %v756
  %v917 = vmul.f32 %v757, %v757
  %v918 = vmul.f32 %v758, %v758
  %v919 = vmul.f32 %v759, %v759
  %v920 = vmul.f32 %v760, %v760
  %v921 = vmul.f32 %v761, %v761
  %v922 = vmul.f32 %v762, %v762
  %v923 = vmul.f32 %v763, %v763
  %v924 = vmul.f32 %v764, %v764
  %v925 = vmul.f32 %v765, %v765
  %v926 = vmul.f32 %v766, %v766
  %v927 = vmul.f32 %v767, %v767
  %v928 = vmul.f32 %v768, %v768
  %v929 = vmul.f32 %v769, %v769
  %v930 = vmul.f32 %v770, %v770
  %v931 = vmul.f32 %v771, %v771
  %v932 = vmul.f32 %v772, %v772
  %v933 = vmul.f32 %v773, %v773
  %v934 = vmul.f32 %v774, %v774
  %v935 = vmul.f32 %v775, %v775
  %v936 = vmul.f32 %v776, %v776
  %v937 = vmul.f32 %v777, %v777
  %v938 = vmul.f32 %v778, %v778
  %v939 = vmul.f32 %v779, %v779
  %v940 = vmul.f32 %v780, %v780
  %v941 = vadd.f32 %v877, %v878
  %v942 = vadd.f32 %v941, %v879
  %v943 = vadd.f32 %v942, %v880
  %944 = vadd.xlane.f32.xlu0 %v943
  %v945 = vpop.xlane.xlu0 %944
  %v946 = vadd.f32 %v881, %v882
  %v947 = vadd.f32 %v946, %v883
  %v948 = vadd.f32 %v947, %v884
  %949 = vadd.xlane.f32.xlu0 %v948
  %v950 = vpop.xlane.xlu0 %949
  %v951 = vadd.f32 %v885, %v886
  %v952 = vadd.f32 %v951, %v887
  %v953 = vadd.f32 %v952, %v888
  %954 = vadd.xlane.f32.xlu0 %v953
  %v955 = vpop.xlane.xlu0 %954
  %v956 = vadd.f32 %v889, %v890
  %v957 = vadd.f32 %v956, %v891
  %v958 = vadd.f32 %v957, %v892
  %959 = vadd.xlane.f32.xlu0 %v958
  %v960 = vpop.xlane.xlu0 %959
  %v961 = vadd.f32 %v893, %v894
  %v962 = vadd.f32 %v961, %v895
  %v963 = vadd.f32 %v962, %v896
  %964 = vadd.xlane.f32.xlu0 %v963
  %v965 = vpop.xlane.xlu0 %964
  %v966 = vadd.f32 %v897, %v898
  %v967 = vadd.f32 %v966, %v899
  %v968 = vadd.f32 %v967, %v900
  %969 = vadd.xlane.f32.xlu0 %v968
  %v970 = vpop.xlane.xlu0 %969
  %v971 = vadd.f32 %v901, %v902
  %v972 = vadd.f32 %v971, %v903
  %v973 = vadd.f32 %v972, %v904
  %974 = vadd.xlane.f32.xlu0 %v973
  %v975 = vpop.xlane.xlu0 %974
  %v976 = vadd.f32 %v905, %v906
  %v977 = vadd.f32 %v976, %v907
  %v978 = vadd.f32 %v977, %v908
  %979 = vadd.xlane.f32.xlu0 %v978
  %v980 = vpop.xlane.xlu0 %979
  %v981 = vadd.f32 %v909, %v910
  %v982 = vadd.f32 %v981, %v911
  %v983 = vadd.f32 %v982, %v912
  %984 = vadd.xlane.f32.xlu0 %v983
  %v985 = vpop.xlane.xlu0 %984
  %v986 = vadd.f32 %v913, %v914
  %v987 = vadd.f32 %v986, %v915
  %v988 = vadd.f32 %v987, %v916
  %989 = vadd.xlane.f32.xlu0 %v988
  %v990 = vpop.xlane.xlu0 %989
  %v991 = vadd.f32 %v917, %v918
  %v992 = vadd.f32 %v991, %v919
  %v993 = vadd.f32 %v992, %v920
  %994 = vadd.xlane.f32.xlu0 %v993
  %v995 = vpop.xlane.xlu0 %994
  %v996 = vadd.f32 %v921, %v922
  %v997 = vadd.f32 %v996, %v923
  %v998 = vadd.f32 %v997, %v924
  %999 = vadd.xlane.f32.xlu0 %v998
  %v1000 = vpop.xlane.xlu0 %999
  %v1001 = vadd.f32 %v925, %v926
  %v1002 = vadd.f32 %v1001, %v927
  %v1003 = vadd.f32 %v1002, %v928
  %1004 = vadd.xlane.f32.xlu0 %v1003
  %v1005 = vpop.xlane.xlu0 %1004
  %v1006 = vadd.f32 %v929, %v930
  %v1007 = vadd.f32 %v1006, %v931
  %v1008 = vadd.f32 %v1007, %v932
  %1009 = vadd.xlane.f32.xlu0 %v1008
  %v1010 = vpop.xlane.xlu0 %1009
  %v1011 = vadd.f32 %v933, %v934
  %v1012 = vadd.f32 %v1011, %v935
  %v1013 = vadd.f32 %v1012, %v936
  %1014 = vadd.xlane.f32.xlu0 %v1013
  %v1015 = vpop.xlane.xlu0 %1014
  %v1016 = vadd.f32 %v937, %v938
  %v1017 = vadd.f32 %v1016, %v939
  %v1018 = vadd.f32 %v1017, %v940
  %1019 = vadd.xlane.f32.xlu0 %v1018
  %v1020 = vpop.xlane.xlu0 %1019
  %v1021 = vmul.f32 %v945, 0.001953125
  %v1022 = vmul.f32 %v950, 0.001953125
  %v1023 = vmul.f32 %v955, 0.001953125
  %v1024 = vmul.f32 %v960, 0.001953125
  %v1025 = vmul.f32 %v965, 0.001953125
  %v1026 = vmul.f32 %v970, 0.001953125
  %v1027 = vmul.f32 %v975, 0.001953125
  %v1028 = vmul.f32 %v980, 0.001953125
  %v1029 = vmul.f32 %v985, 0.001953125
  %v1030 = vmul.f32 %v990, 0.001953125
  %v1031 = vmul.f32 %v995, 0.001953125
  %v1032 = vmul.f32 %v1000, 0.001953125
  %v1033 = vmul.f32 %v1005, 0.001953125
  %v1034 = vmul.f32 %v1010, 0.001953125
  %v1035 = vmul.f32 %v1015, 0.001953125
  %v1036 = vmul.f32 %v1020, 0.001953125
  %v1037 = vmul.f32 %v861, %v861
  %v1038 = vmul.f32 %v862, %v862
  %v1039 = vmul.f32 %v863, %v863
  %v1040 = vmul.f32 %v864, %v864
  %v1041 = vmul.f32 %v865, %v865
  %v1042 = vmul.f32 %v866, %v866
  %v1043 = vmul.f32 %v867, %v867
  %v1044 = vmul.f32 %v868, %v868
  %v1045 = vmul.f32 %v869, %v869
  %v1046 = vmul.f32 %v870, %v870
  %v1047 = vmul.f32 %v871, %v871
  %v1048 = vmul.f32 %v872, %v872
  %v1049 = vmul.f32 %v873, %v873
  %v1050 = vmul.f32 %v874, %v874
  %v1051 = vmul.f32 %v875, %v875
  %v1052 = vmul.f32 %v876, %v876
  %v1053 = vsub.f32 %v1021, %v1037
  %v1054 = vsub.f32 %v1022, %v1038
  %v1055 = vsub.f32 %v1023, %v1039
  %v1056 = vsub.f32 %v1024, %v1040
  %v1057 = vsub.f32 %v1025, %v1041
  %v1058 = vsub.f32 %v1026, %v1042
  %v1059 = vsub.f32 %v1027, %v1043
  %v1060 = vsub.f32 %v1028, %v1044
  %v1061 = vsub.f32 %v1029, %v1045
  %v1062 = vsub.f32 %v1030, %v1046
  %v1063 = vsub.f32 %v1031, %v1047
  %v1064 = vsub.f32 %v1032, %v1048
  %v1065 = vsub.f32 %v1033, %v1049
  %v1066 = vsub.f32 %v1034, %v1050
  %v1067 = vsub.f32 %v1035, %v1051
  %v1068 = vsub.f32 %v1036, %v1052
  %v1069 = vmax.f32 %v1053, 0.0
  %v1070 = vmax.f32 %v1054, 0.0
  %v1071 = vmax.f32 %v1055, 0.0
  %v1072 = vmax.f32 %v1056, 0.0
  %v1073 = vmax.f32 %v1057, 0.0
  %v1074 = vmax.f32 %v1058, 0.0
  %v1075 = vmax.f32 %v1059, 0.0
  %v1076 = vmax.f32 %v1060, 0.0
  %v1077 = vmax.f32 %v1061, 0.0
  %v1078 = vmax.f32 %v1062, 0.0
  %v1079 = vmax.f32 %v1063, 0.0
  %v1080 = vmax.f32 %v1064, 0.0
  %v1081 = vmax.f32 %v1065, 0.0
  %v1082 = vmax.f32 %v1066, 0.0
  %v1083 = vmax.f32 %v1067, 0.0
  %v1084 = vmax.f32 %v1068, 0.0
  %v1085 = vld [vmem:[%s4] sm:$0xff]
  %v1086 = vld [vmem:[%s4 + $0x8] sm:$0xff]
  %v1087 = vld [vmem:[%s4 + $0x10] sm:$0xff]
  %v1088 = vld [vmem:[%s4 + $0x18] sm:$0xff]
  %v1089 = vld [vmem:[%s4 + $0x20] sm:$0xff]
  %v1090 = vld [vmem:[%s4 + $0x28] sm:$0xff]
  %v1091 = vld [vmem:[%s4 + $0x30] sm:$0xff]
  %v1092 = vld [vmem:[%s4 + $0x38] sm:$0xff]
  %v1093 = vld [vmem:[%s4 + $0x40] sm:$0xff]
  %v1094 = vld [vmem:[%s4 + $0x48] sm:$0xff]
  %v1095 = vld [vmem:[%s4 + $0x50] sm:$0xff]
  %v1096 = vld [vmem:[%s4 + $0x58] sm:$0xff]
  %v1097 = vld [vmem:[%s4 + $0x60] sm:$0xff]
  %v1098 = vld [vmem:[%s4 + $0x68] sm:$0xff]
  %v1099 = vld [vmem:[%s4 + $0x70] sm:$0xff]
  %v1100 = vld [vmem:[%s4 + $0x78] sm:$0xff]
  %v1101 = vadd.f32 %v1069, 1e-05
  %v1102 = vadd.f32 %v1070, 1e-05
  %v1103 = vadd.f32 %v1071, 1e-05
  %v1104 = vadd.f32 %v1072, 1e-05
  %v1105 = vadd.f32 %v1073, 1e-05
  %v1106 = vadd.f32 %v1074, 1e-05
  %v1107 = vadd.f32 %v1075, 1e-05
  %v1108 = vadd.f32 %v1076, 1e-05
  %v1109 = vadd.f32 %v1077, 1e-05
  %v1110 = vadd.f32 %v1078, 1e-05
  %v1111 = vadd.f32 %v1079, 1e-05
  %v1112 = vadd.f32 %v1080, 1e-05
  %v1113 = vadd.f32 %v1081, 1e-05
  %v1114 = vadd.f32 %v1082, 1e-05
  %v1115 = vadd.f32 %v1083, 1e-05
  %v1116 = vadd.f32 %v1084, 1e-05
  %v1117 = vrsqrt.pop %v1101
  %v1118 = vmul.f32 %v1117, %v1101
  %v1119 = vmul.f32 %v1118, %v1117
  %v1120 = vmul.f32 0.5, %v1119
  %v1121 = vsub.f32 1.5, %v1120
  %v1122 = vmul.f32 %v1117, %v1121
  %vm1123 = vweird.f32 %v1101
  %vm1124 = vweird.f32 %v1117
  %vm1125 = vmor %vm1123, %vm1124
  %v1126 = vsel %vm1125, %v1117, %v1122
  %v1127 = vrsqrt.pop %v1102
  %v1128 = vmul.f32 %v1127, %v1102
  %v1129 = vmul.f32 %v1128, %v1127
  %v1130 = vmul.f32 0.5, %v1129
  %v1131 = vsub.f32 1.5, %v1130
  %v1132 = vmul.f32 %v1127, %v1131
  %vm1133 = vweird.f32 %v1102
  %vm1134 = vweird.f32 %v1127
  %vm1135 = vmor %vm1133, %vm1134
  %v1136 = vsel %vm1135, %v1127, %v1132
  %v1137 = vrsqrt.pop %v1103
  %v1138 = vmul.f32 %v1137, %v1103
  %v1139 = vmul.f32 %v1138, %v1137
  %v1140 = vmul.f32 0.5, %v1139
  %v1141 = vsub.f32 1.5, %v1140
  %v1142 = vmul.f32 %v1137, %v1141
  %vm1143 = vweird.f32 %v1103
  %vm1144 = vweird.f32 %v1137
  %vm1145 = vmor %vm1143, %vm1144
  %v1146 = vsel %vm1145, %v1137, %v1142
  %v1147 = vrsqrt.pop %v1104
  %v1148 = vmul.f32 %v1147, %v1104
  %v1149 = vmul.f32 %v1148, %v1147
  %v1150 = vmul.f32 0.5, %v1149
  %v1151 = vsub.f32 1.5, %v1150
  %v1152 = vmul.f32 %v1147, %v1151
  %vm1153 = vweird.f32 %v1104
  %vm1154 = vweird.f32 %v1147
  %vm1155 = vmor %vm1153, %vm1154
  %v1156 = vsel %vm1155, %v1147, %v1152
  %v1157 = vrsqrt.pop %v1105
  %v1158 = vmul.f32 %v1157, %v1105
  %v1159 = vmul.f32 %v1158, %v1157
  %v1160 = vmul.f32 0.5, %v1159
  %v1161 = vsub.f32 1.5, %v1160
  %v1162 = vmul.f32 %v1157, %v1161
  %vm1163 = vweird.f32 %v1105
  %vm1164 = vweird.f32 %v1157
  %vm1165 = vmor %vm1163, %vm1164
  %v1166 = vsel %vm1165, %v1157, %v1162
  %v1167 = vrsqrt.pop %v1106
  %v1168 = vmul.f32 %v1167, %v1106
  %v1169 = vmul.f32 %v1168, %v1167
  %v1170 = vmul.f32 0.5, %v1169
  %v1171 = vsub.f32 1.5, %v1170
  %v1172 = vmul.f32 %v1167, %v1171
  %vm1173 = vweird.f32 %v1106
  %vm1174 = vweird.f32 %v1167
  %vm1175 = vmor %vm1173, %vm1174
  %v1176 = vsel %vm1175, %v1167, %v1172
  %v1177 = vrsqrt.pop %v1107
  %v1178 = vmul.f32 %v1177, %v1107
  %v1179 = vmul.f32 %v1178, %v1177
  %v1180 = vmul.f32 0.5, %v1179
  %v1181 = vsub.f32 1.5, %v1180
  %v1182 = vmul.f32 %v1177, %v1181
  %vm1183 = vweird.f32 %v1107
  %vm1184 = vweird.f32 %v1177
  %vm1185 = vmor %vm1183, %vm1184
  %v1186 = vsel %vm1185, %v1177, %v1182
  %v1187 = vrsqrt.pop %v1108
  %v1188 = vmul.f32 %v1187, %v1108
  %v1189 = vmul.f32 %v1188, %v1187
  %v1190 = vmul.f32 0.5, %v1189
  %v1191 = vsub.f32 1.5, %v1190
  %v1192 = vmul.f32 %v1187, %v1191
  %vm1193 = vweird.f32 %v1108
  %vm1194 = vweird.f32 %v1187
  %vm1195 = vmor %vm1193, %vm1194
  %v1196 = vsel %vm1195, %v1187, %v1192
  %v1197 = vrsqrt.pop %v1109
  %v1198 = vmul.f32 %v1197, %v1109
  %v1199 = vmul.f32 %v1198, %v1197
  %v1200 = vmul.f32 0.5, %v1199
  %v1201 = vsub.f32 1.5, %v1200
  %v1202 = vmul.f32 %v1197, %v1201
  %vm1203 = vweird.f32 %v1109
  %vm1204 = vweird.f32 %v1197
  %vm1205 = vmor %vm1203, %vm1204
  %v1206 = vsel %vm1205, %v1197, %v1202
  %v1207 = vrsqrt.pop %v1110
  %v1208 = vmul.f32 %v1207, %v1110
  %v1209 = vmul.f32 %v1208, %v1207
  %v1210 = vmul.f32 0.5, %v1209
  %v1211 = vsub.f32 1.5, %v1210
  %v1212 = vmul.f32 %v1207, %v1211
  %vm1213 = vweird.f32 %v1110
  %vm1214 = vweird.f32 %v1207
  %vm1215 = vmor %vm1213, %vm1214
  %v1216 = vsel %vm1215, %v1207, %v1212
  %v1217 = vrsqrt.pop %v1111
  %v1218 = vmul.f32 %v1217, %v1111
  %v1219 = vmul.f32 %v1218, %v1217
  %v1220 = vmul.f32 0.5, %v1219
  %v1221 = vsub.f32 1.5, %v1220
  %v1222 = vmul.f32 %v1217, %v1221
  %vm1223 = vweird.f32 %v1111
  %vm1224 = vweird.f32 %v1217
  %vm1225 = vmor %vm1223, %vm1224
  %v1226 = vsel %vm1225, %v1217, %v1222
  %v1227 = vrsqrt.pop %v1112
  %v1228 = vmul.f32 %v1227, %v1112
  %v1229 = vmul.f32 %v1228, %v1227
  %v1230 = vmul.f32 0.5, %v1229
  %v1231 = vsub.f32 1.5, %v1230
  %v1232 = vmul.f32 %v1227, %v1231
  %vm1233 = vweird.f32 %v1112
  %vm1234 = vweird.f32 %v1227
  %vm1235 = vmor %vm1233, %vm1234
  %v1236 = vsel %vm1235, %v1227, %v1232
  %v1237 = vrsqrt.pop %v1113
  %v1238 = vmul.f32 %v1237, %v1113
  %v1239 = vmul.f32 %v1238, %v1237
  %v1240 = vmul.f32 0.5, %v1239
  %v1241 = vsub.f32 1.5, %v1240
  %v1242 = vmul.f32 %v1237, %v1241
  %vm1243 = vweird.f32 %v1113
  %vm1244 = vweird.f32 %v1237
  %vm1245 = vmor %vm1243, %vm1244
  %v1246 = vsel %vm1245, %v1237, %v1242
  %v1247 = vrsqrt.pop %v1114
  %v1248 = vmul.f32 %v1247, %v1114
  %v1249 = vmul.f32 %v1248, %v1247
  %v1250 = vmul.f32 0.5, %v1249
  %v1251 = vsub.f32 1.5, %v1250
  %v1252 = vmul.f32 %v1247, %v1251
  %vm1253 = vweird.f32 %v1114
  %vm1254 = vweird.f32 %v1247
  %vm1255 = vmor %vm1253, %vm1254
  %v1256 = vsel %vm1255, %v1247, %v1252
  %v1257 = vrsqrt.pop %v1115
  %v1258 = vmul.f32 %v1257, %v1115
  %v1259 = vmul.f32 %v1258, %v1257
  %v1260 = vmul.f32 0.5, %v1259
  %v1261 = vsub.f32 1.5, %v1260
  %v1262 = vmul.f32 %v1257, %v1261
  %vm1263 = vweird.f32 %v1115
  %vm1264 = vweird.f32 %v1257
  %vm1265 = vmor %vm1263, %vm1264
  %v1266 = vsel %vm1265, %v1257, %v1262
  %v1267 = vrsqrt.pop %v1116
  %v1268 = vmul.f32 %v1267, %v1116
  %v1269 = vmul.f32 %v1268, %v1267
  %v1270 = vmul.f32 0.5, %v1269
  %v1271 = vsub.f32 1.5, %v1270
  %v1272 = vmul.f32 %v1267, %v1271
  %vm1273 = vweird.f32 %v1116
  %vm1274 = vweird.f32 %v1267
  %vm1275 = vmor %vm1273, %vm1274
  %v1276 = vsel %vm1275, %v1267, %v1272
  %v1277 = vmul.f32 %v1085, %v1126
  %v1278 = vmul.f32 %v1086, %v1136
  %v1279 = vmul.f32 %v1087, %v1146
  %v1280 = vmul.f32 %v1088, %v1156
  %v1281 = vmul.f32 %v1089, %v1166
  %v1282 = vmul.f32 %v1090, %v1176
  %v1283 = vmul.f32 %v1091, %v1186
  %v1284 = vmul.f32 %v1092, %v1196
  %v1285 = vmul.f32 %v1093, %v1206
  %v1286 = vmul.f32 %v1094, %v1216
  %v1287 = vmul.f32 %v1095, %v1226
  %v1288 = vmul.f32 %v1096, %v1236
  %v1289 = vmul.f32 %v1097, %v1246
  %v1290 = vmul.f32 %v1098, %v1256
  %v1291 = vmul.f32 %v1099, %v1266
  %v1292 = vmul.f32 %v1100, %v1276
  %v1293 = vld [vmem:[%s5] sm:$0xff]
  %v1294 = vld [vmem:[%s5 + $0x8] sm:$0xff]
  %v1295 = vld [vmem:[%s5 + $0x10] sm:$0xff]
  %v1296 = vld [vmem:[%s5 + $0x18] sm:$0xff]
  %v1297 = vld [vmem:[%s5 + $0x20] sm:$0xff]
  %v1298 = vld [vmem:[%s5 + $0x28] sm:$0xff]
  %v1299 = vld [vmem:[%s5 + $0x30] sm:$0xff]
  %v1300 = vld [vmem:[%s5 + $0x38] sm:$0xff]
  %v1301 = vld [vmem:[%s5 + $0x40] sm:$0xff]
  %v1302 = vld [vmem:[%s5 + $0x48] sm:$0xff]
  %v1303 = vld [vmem:[%s5 + $0x50] sm:$0xff]
  %v1304 = vld [vmem:[%s5 + $0x58] sm:$0xff]
  %v1305 = vld [vmem:[%s5 + $0x60] sm:$0xff]
  %v1306 = vld [vmem:[%s5 + $0x68] sm:$0xff]
  %v1307 = vld [vmem:[%s5 + $0x70] sm:$0xff]
  %v1308 = vld [vmem:[%s5 + $0x78] sm:$0xff]
  %v1309 = vmul.f32 %v861, %v1277
  %v1310 = vmul.f32 %v862, %v1278
  %v1311 = vmul.f32 %v863, %v1279
  %v1312 = vmul.f32 %v864, %v1280
  %v1313 = vmul.f32 %v865, %v1281
  %v1314 = vmul.f32 %v866, %v1282
  %v1315 = vmul.f32 %v867, %v1283
  %v1316 = vmul.f32 %v868, %v1284
  %v1317 = vmul.f32 %v869, %v1285
  %v1318 = vmul.f32 %v870, %v1286
  %v1319 = vmul.f32 %v871, %v1287
  %v1320 = vmul.f32 %v872, %v1288
  %v1321 = vmul.f32 %v873, %v1289
  %v1322 = vmul.f32 %v874, %v1290
  %v1323 = vmul.f32 %v875, %v1291
  %v1324 = vmul.f32 %v876, %v1292
  %v1325 = vsub.f32 %v1293, %v1309
  %v1326 = vsub.f32 %v1294, %v1310
  %v1327 = vsub.f32 %v1295, %v1311
  %v1328 = vsub.f32 %v1296, %v1312
  %v1329 = vsub.f32 %v1297, %v1313
  %v1330 = vsub.f32 %v1298, %v1314
  %v1331 = vsub.f32 %v1299, %v1315
  %v1332 = vsub.f32 %v1300, %v1316
  %v1333 = vsub.f32 %v1301, %v1317
  %v1334 = vsub.f32 %v1302, %v1318
  %v1335 = vsub.f32 %v1303, %v1319
  %v1336 = vsub.f32 %v1304, %v1320
  %v1337 = vsub.f32 %v1305, %v1321
  %v1338 = vsub.f32 %v1306, %v1322
  %v1339 = vsub.f32 %v1307, %v1323
  %v1340 = vsub.f32 %v1308, %v1324
  %v1341 = vld [vmem:[%s6] sm:$0xff]
  %v1342 = vld [vmem:[%s6 + $0x8] sm:$0xff]
  %v1343 = vld [vmem:[%s6 + $0x10] sm:$0xff]
  %v1344 = vld [vmem:[%s6 + $0x18] sm:$0xff]
  %v1345 = vld [vmem:[%s6 + $0x20] sm:$0xff]
  %v1346 = vld [vmem:[%s6 + $0x28] sm:$0xff]
  %v1347 = vld [vmem:[%s6 + $0x30] sm:$0xff]
  %v1348 = vld [vmem:[%s6 + $0x38] sm:$0xff]
  %v1349 = vld [vmem:[%s6 + $0x40] sm:$0xff]
  %v1350 = vld [vmem:[%s6 + $0x48] sm:$0xff]
  %v1351 = vld [vmem:[%s6 + $0x50] sm:$0xff]
  %v1352 = vld [vmem:[%s6 + $0x58] sm:$0xff]
  %v1353 = vld [vmem:[%s6 + $0x60] sm:$0xff]
  %v1354 = vld [vmem:[%s6 + $0x68] sm:$0xff]
  %v1355 = vld [vmem:[%s6 + $0x70] sm:$0xff]
  %v1356 = vld [vmem:[%s6 + $0x78] sm:$0xff]
  %1358 = vset.pattern.permute.xlu0 0
  %1359 = vperm.xlu0 %1358, %v1277
  %v1360 = vpop.permute.xlu0 %1359
  %1363 = vset.pattern.permute.xlu0 0
  %1364 = vperm.xlu0 %1363, %v1278
  %v1365 = vpop.permute.xlu0 %1364
  %1368 = vset.pattern.permute.xlu0 0
  %1369 = vperm.xlu0 %1368, %v1279
  %v1370 = vpop.permute.xlu0 %1369
  %1373 = vset.pattern.permute.xlu0 0
  %1374 = vperm.xlu0 %1373, %v1280
  %v1375 = vpop.permute.xlu0 %1374
  %1378 = vset.pattern.permute.xlu0 0
  %1379 = vperm.xlu0 %1378, %v1281
  %v1380 = vpop.permute.xlu0 %1379
  %1383 = vset.pattern.permute.xlu0 0
  %1384 = vperm.xlu0 %1383, %v1282
  %v1385 = vpop.permute.xlu0 %1384
  %1388 = vset.pattern.permute.xlu0 0
  %1389 = vperm.xlu0 %1388, %v1283
  %v1390 = vpop.permute.xlu0 %1389
  %1393 = vset.pattern.permute.xlu0 0
  %1394 = vperm.xlu0 %1393, %v1284
  %v1395 = vpop.permute.xlu0 %1394
  %1398 = vset.pattern.permute.xlu0 0
  %1399 = vperm.xlu0 %1398, %v1285
  %v1400 = vpop.permute.xlu0 %1399
  %1403 = vset.pattern.permute.xlu0 0
  %1404 = vperm.xlu0 %1403, %v1286
  %v1405 = vpop.permute.xlu0 %1404
  %1408 = vset.pattern.permute.xlu0 0
  %1409 = vperm.xlu0 %1408, %v1287
  %v1410 = vpop.permute.xlu0 %1409
  %1413 = vset.pattern.permute.xlu0 0
  %1414 = vperm.xlu0 %1413, %v1288
  %v1415 = vpop.permute.xlu0 %1414
  %1418 = vset.pattern.permute.xlu0 0
  %1419 = vperm.xlu0 %1418, %v1289
  %v1420 = vpop.permute.xlu0 %1419
  %1423 = vset.pattern.permute.xlu0 0
  %1424 = vperm.xlu0 %1423, %v1290
  %v1425 = vpop.permute.xlu0 %1424
  %1428 = vset.pattern.permute.xlu0 0
  %1429 = vperm.xlu0 %1428, %v1291
  %v1430 = vpop.permute.xlu0 %1429
  %1433 = vset.pattern.permute.xlu0 0
  %1434 = vperm.xlu0 %1433, %v1292
  %v1435 = vpop.permute.xlu0 %1434
  %v1437 = vmul.f32 %v717, %v1360
  %v1438 = vmul.f32 %v718, %v1360
  %v1439 = vmul.f32 %v721, %v1365
  %v1440 = vmul.f32 %v722, %v1365
  %v1441 = vmul.f32 %v725, %v1370
  %v1442 = vmul.f32 %v726, %v1370
  %v1443 = vmul.f32 %v729, %v1375
  %v1444 = vmul.f32 %v730, %v1375
  %v1445 = vmul.f32 %v733, %v1380
  %v1446 = vmul.f32 %v734, %v1380
  %v1447 = vmul.f32 %v737, %v1385
  %v1448 = vmul.f32 %v738, %v1385
  %v1449 = vmul.f32 %v741, %v1390
  %v1450 = vmul.f32 %v742, %v1390
  %v1451 = vmul.f32 %v745, %v1395
  %v1452 = vmul.f32 %v746, %v1395
  %v1453 = vmul.f32 %v749, %v1400
  %v1454 = vmul.f32 %v750, %v1400
  %v1455 = vmul.f32 %v753, %v1405
  %v1456 = vmul.f32 %v754, %v1405
  %v1457 = vmul.f32 %v757, %v1410
  %v1458 = vmul.f32 %v758, %v1410
  %v1459 = vmul.f32 %v761, %v1415
  %v1460 = vmul.f32 %v762, %v1415
  %v1461 = vmul.f32 %v765, %v1420
  %v1462 = vmul.f32 %v766, %v1420
  %v1463 = vmul.f32 %v769, %v1425
  %v1464 = vmul.f32 %v770, %v1425
  %v1465 = vmul.f32 %v773, %v1430
  %v1466 = vmul.f32 %v774, %v1430
  %v1467 = vmul.f32 %v777, %v1435
  %v1468 = vmul.f32 %v778, %v1435
  %1470 = vset.pattern.permute.xlu0 0
  %1471 = vperm.xlu0 %1470, %v1325
  %v1472 = vpop.permute.xlu0 %1471
  %1475 = vset.pattern.permute.xlu0 0
  %1476 = vperm.xlu0 %1475, %v1326
  %v1477 = vpop.permute.xlu0 %1476
  %1480 = vset.pattern.permute.xlu0 0
  %1481 = vperm.xlu0 %1480, %v1327
  %v1482 = vpop.permute.xlu0 %1481
  %1485 = vset.pattern.permute.xlu0 0
  %1486 = vperm.xlu0 %1485, %v1328
  %v1487 = vpop.permute.xlu0 %1486
  %1490 = vset.pattern.permute.xlu0 0
  %1491 = vperm.xlu0 %1490, %v1329
  %v1492 = vpop.permute.xlu0 %1491
  %1495 = vset.pattern.permute.xlu0 0
  %1496 = vperm.xlu0 %1495, %v1330
  %v1497 = vpop.permute.xlu0 %1496
  %1500 = vset.pattern.permute.xlu0 0
  %1501 = vperm.xlu0 %1500, %v1331
  %v1502 = vpop.permute.xlu0 %1501
  %1505 = vset.pattern.permute.xlu0 0
  %1506 = vperm.xlu0 %1505, %v1332
  %v1507 = vpop.permute.xlu0 %1506
  %1510 = vset.pattern.permute.xlu0 0
  %1511 = vperm.xlu0 %1510, %v1333
  %v1512 = vpop.permute.xlu0 %1511
  %1515 = vset.pattern.permute.xlu0 0
  %1516 = vperm.xlu0 %1515, %v1334
  %v1517 = vpop.permute.xlu0 %1516
  %1520 = vset.pattern.permute.xlu0 0
  %1521 = vperm.xlu0 %1520, %v1335
  %v1522 = vpop.permute.xlu0 %1521
  %1525 = vset.pattern.permute.xlu0 0
  %1526 = vperm.xlu0 %1525, %v1336
  %v1527 = vpop.permute.xlu0 %1526
  %1530 = vset.pattern.permute.xlu0 0
  %1531 = vperm.xlu0 %1530, %v1337
  %v1532 = vpop.permute.xlu0 %1531
  %1535 = vset.pattern.permute.xlu0 0
  %1536 = vperm.xlu0 %1535, %v1338
  %v1537 = vpop.permute.xlu0 %1536
  %1540 = vset.pattern.permute.xlu0 0
  %1541 = vperm.xlu0 %1540, %v1339
  %v1542 = vpop.permute.xlu0 %1541
  %1545 = vset.pattern.permute.xlu0 0
  %1546 = vperm.xlu0 %1545, %v1340
  %v1547 = vpop.permute.xlu0 %1546
  %v1549 = vadd.f32 %v1437, %v1472
  %v1550 = vadd.f32 %v1438, %v1472
  %v1551 = vadd.f32 %v1439, %v1477
  %v1552 = vadd.f32 %v1440, %v1477
  %v1553 = vadd.f32 %v1441, %v1482
  %v1554 = vadd.f32 %v1442, %v1482
  %v1555 = vadd.f32 %v1443, %v1487
  %v1556 = vadd.f32 %v1444, %v1487
  %v1557 = vadd.f32 %v1445, %v1492
  %v1558 = vadd.f32 %v1446, %v1492
  %v1559 = vadd.f32 %v1447, %v1497
  %v1560 = vadd.f32 %v1448, %v1497
  %v1561 = vadd.f32 %v1449, %v1502
  %v1562 = vadd.f32 %v1450, %v1502
  %v1563 = vadd.f32 %v1451, %v1507
  %v1564 = vadd.f32 %v1452, %v1507
  %v1565 = vadd.f32 %v1453, %v1512
  %v1566 = vadd.f32 %v1454, %v1512
  %v1567 = vadd.f32 %v1455, %v1517
  %v1568 = vadd.f32 %v1456, %v1517
  %v1569 = vadd.f32 %v1457, %v1522
  %v1570 = vadd.f32 %v1458, %v1522
  %v1571 = vadd.f32 %v1459, %v1527
  %v1572 = vadd.f32 %v1460, %v1527
  %v1573 = vadd.f32 %v1461, %v1532
  %v1574 = vadd.f32 %v1462, %v1532
  %v1575 = vadd.f32 %v1463, %v1537
  %v1576 = vadd.f32 %v1464, %v1537
  %v1577 = vadd.f32 %v1465, %v1542
  %v1578 = vadd.f32 %v1466, %v1542
  %v1579 = vadd.f32 %v1467, %v1547
  %v1580 = vadd.f32 %v1468, %v1547
  %vm1581 = vcmp.ge.f32.partialorder %v1549, 0.0
  %vm1582 = vcmp.ge.f32.partialorder %v1550, 0.0
  %vm1583 = vcmp.ge.f32.partialorder %v1551, 0.0
  %vm1584 = vcmp.ge.f32.partialorder %v1552, 0.0
  %vm1585 = vcmp.ge.f32.partialorder %v1553, 0.0
  %vm1586 = vcmp.ge.f32.partialorder %v1554, 0.0
  %vm1587 = vcmp.ge.f32.partialorder %v1555, 0.0
  %vm1588 = vcmp.ge.f32.partialorder %v1556, 0.0
  %vm1589 = vcmp.ge.f32.partialorder %v1557, 0.0
  %vm1590 = vcmp.ge.f32.partialorder %v1558, 0.0
  %vm1591 = vcmp.ge.f32.partialorder %v1559, 0.0
  %vm1592 = vcmp.ge.f32.partialorder %v1560, 0.0
  %vm1593 = vcmp.ge.f32.partialorder %v1561, 0.0
  %vm1594 = vcmp.ge.f32.partialorder %v1562, 0.0
  %vm1595 = vcmp.ge.f32.partialorder %v1563, 0.0
  %vm1596 = vcmp.ge.f32.partialorder %v1564, 0.0
  %vm1597 = vcmp.ge.f32.partialorder %v1565, 0.0
  %vm1598 = vcmp.ge.f32.partialorder %v1566, 0.0
  %vm1599 = vcmp.ge.f32.partialorder %v1567, 0.0
  %vm1600 = vcmp.ge.f32.partialorder %v1568, 0.0
  %vm1601 = vcmp.ge.f32.partialorder %v1569, 0.0
  %vm1602 = vcmp.ge.f32.partialorder %v1570, 0.0
  %vm1603 = vcmp.ge.f32.partialorder %v1571, 0.0
  %vm1604 = vcmp.ge.f32.partialorder %v1572, 0.0
  %vm1605 = vcmp.ge.f32.partialorder %v1573, 0.0
  %vm1606 = vcmp.ge.f32.partialorder %v1574, 0.0
  %vm1607 = vcmp.ge.f32.partialorder %v1575, 0.0
  %vm1608 = vcmp.ge.f32.partialorder %v1576, 0.0
  %vm1609 = vcmp.ge.f32.partialorder %v1577, 0.0
  %vm1610 = vcmp.ge.f32.partialorder %v1578, 0.0
  %vm1611 = vcmp.ge.f32.partialorder %v1579, 0.0
  %vm1612 = vcmp.ge.f32.partialorder %v1580, 0.0
  %v1613 = vmul.f32 %v1549, 0.2
  %v1614 = vmul.f32 %v1550, 0.2
  %v1615 = vmul.f32 %v1551, 0.2
  %v1616 = vmul.f32 %v1552, 0.2
  %v1617 = vmul.f32 %v1553, 0.2
  %v1618 = vmul.f32 %v1554, 0.2
  %v1619 = vmul.f32 %v1555, 0.2
  %v1620 = vmul.f32 %v1556, 0.2
  %v1621 = vmul.f32 %v1557, 0.2
  %v1622 = vmul.f32 %v1558, 0.2
  %v1623 = vmul.f32 %v1559, 0.2
  %v1624 = vmul.f32 %v1560, 0.2
  %v1625 = vmul.f32 %v1561, 0.2
  %v1626 = vmul.f32 %v1562, 0.2
  %v1627 = vmul.f32 %v1563, 0.2
  %v1628 = vmul.f32 %v1564, 0.2
  %v1629 = vmul.f32 %v1565, 0.2
  %v1630 = vmul.f32 %v1566, 0.2
  %v1631 = vmul.f32 %v1567, 0.2
  %v1632 = vmul.f32 %v1568, 0.2
  %v1633 = vmul.f32 %v1569, 0.2
  %v1634 = vmul.f32 %v1570, 0.2
  %v1635 = vmul.f32 %v1571, 0.2
  %v1636 = vmul.f32 %v1572, 0.2
  %v1637 = vmul.f32 %v1573, 0.2
  %v1638 = vmul.f32 %v1574, 0.2
  %v1639 = vmul.f32 %v1575, 0.2
  %v1640 = vmul.f32 %v1576, 0.2
  %v1641 = vmul.f32 %v1577, 0.2
  %v1642 = vmul.f32 %v1578, 0.2
  %v1643 = vmul.f32 %v1579, 0.2
  %v1644 = vmul.f32 %v1580, 0.2
  %v1645 = vsel %vm1581, %v1549, %v1613
  %v1646 = vsel %vm1582, %v1550, %v1614
  %v1647 = vsel %vm1583, %v1551, %v1615
  %v1648 = vsel %vm1584, %v1552, %v1616
  %v1649 = vsel %vm1585, %v1553, %v1617
  %v1650 = vsel %vm1586, %v1554, %v1618
  %v1651 = vsel %vm1587, %v1555, %v1619
  %v1652 = vsel %vm1588, %v1556, %v1620
  %v1653 = vsel %vm1589, %v1557, %v1621
  %v1654 = vsel %vm1590, %v1558, %v1622
  %v1655 = vsel %vm1591, %v1559, %v1623
  %v1656 = vsel %vm1592, %v1560, %v1624
  %v1657 = vsel %vm1593, %v1561, %v1625
  %v1658 = vsel %vm1594, %v1562, %v1626
  %v1659 = vsel %vm1595, %v1563, %v1627
  %v1660 = vsel %vm1596, %v1564, %v1628
  %v1661 = vsel %vm1597, %v1565, %v1629
  %v1662 = vsel %vm1598, %v1566, %v1630
  %v1663 = vsel %vm1599, %v1567, %v1631
  %v1664 = vsel %vm1600, %v1568, %v1632
  %v1665 = vsel %vm1601, %v1569, %v1633
  %v1666 = vsel %vm1602, %v1570, %v1634
  %v1667 = vsel %vm1603, %v1571, %v1635
  %v1668 = vsel %vm1604, %v1572, %v1636
  %v1669 = vsel %vm1605, %v1573, %v1637
  %v1670 = vsel %vm1606, %v1574, %v1638
  %v1671 = vsel %vm1607, %v1575, %v1639
  %v1672 = vsel %vm1608, %v1576, %v1640
  %v1673 = vsel %vm1609, %v1577, %v1641
  %v1674 = vsel %vm1610, %v1578, %v1642
  %v1675 = vsel %vm1611, %v1579, %v1643
  %v1676 = vsel %vm1612, %v1580, %v1644
  %1678 = vset.pattern.permute.xlu0 0
  %1679 = vperm.xlu0 %1678, %v1341
  %v1680 = vpop.permute.xlu0 %1679
  %1683 = vset.pattern.permute.xlu0 0
  %1684 = vperm.xlu0 %1683, %v1342
  %v1685 = vpop.permute.xlu0 %1684
  %1688 = vset.pattern.permute.xlu0 0
  %1689 = vperm.xlu0 %1688, %v1343
  %v1690 = vpop.permute.xlu0 %1689
  %1693 = vset.pattern.permute.xlu0 0
  %1694 = vperm.xlu0 %1693, %v1344
  %v1695 = vpop.permute.xlu0 %1694
  %1698 = vset.pattern.permute.xlu0 0
  %1699 = vperm.xlu0 %1698, %v1345
  %v1700 = vpop.permute.xlu0 %1699
  %1703 = vset.pattern.permute.xlu0 0
  %1704 = vperm.xlu0 %1703, %v1346
  %v1705 = vpop.permute.xlu0 %1704
  %1708 = vset.pattern.permute.xlu0 0
  %1709 = vperm.xlu0 %1708, %v1347
  %v1710 = vpop.permute.xlu0 %1709
  %1713 = vset.pattern.permute.xlu0 0
  %1714 = vperm.xlu0 %1713, %v1348
  %v1715 = vpop.permute.xlu0 %1714
  %1718 = vset.pattern.permute.xlu0 0
  %1719 = vperm.xlu0 %1718, %v1349
  %v1720 = vpop.permute.xlu0 %1719
  %1723 = vset.pattern.permute.xlu0 0
  %1724 = vperm.xlu0 %1723, %v1350
  %v1725 = vpop.permute.xlu0 %1724
  %1728 = vset.pattern.permute.xlu0 0
  %1729 = vperm.xlu0 %1728, %v1351
  %v1730 = vpop.permute.xlu0 %1729
  %1733 = vset.pattern.permute.xlu0 0
  %1734 = vperm.xlu0 %1733, %v1352
  %v1735 = vpop.permute.xlu0 %1734
  %1738 = vset.pattern.permute.xlu0 0
  %1739 = vperm.xlu0 %1738, %v1353
  %v1740 = vpop.permute.xlu0 %1739
  %1743 = vset.pattern.permute.xlu0 0
  %1744 = vperm.xlu0 %1743, %v1354
  %v1745 = vpop.permute.xlu0 %1744
  %1748 = vset.pattern.permute.xlu0 0
  %1749 = vperm.xlu0 %1748, %v1355
  %v1750 = vpop.permute.xlu0 %1749
  %1753 = vset.pattern.permute.xlu0 0
  %1754 = vperm.xlu0 %1753, %v1356
  %v1755 = vpop.permute.xlu0 %1754
  %v1757 = vmul.f32 %v1680, %v1645
  %v1758 = vmul.f32 %v1680, %v1646
  %v1759 = vmul.f32 %v1685, %v1647
  %v1760 = vmul.f32 %v1685, %v1648
  %v1761 = vmul.f32 %v1690, %v1649
  %v1762 = vmul.f32 %v1690, %v1650
  %v1763 = vmul.f32 %v1695, %v1651
  %v1764 = vmul.f32 %v1695, %v1652
  %v1765 = vmul.f32 %v1700, %v1653
  %v1766 = vmul.f32 %v1700, %v1654
  %v1767 = vmul.f32 %v1705, %v1655
  %v1768 = vmul.f32 %v1705, %v1656
  %v1769 = vmul.f32 %v1710, %v1657
  %v1770 = vmul.f32 %v1710, %v1658
  %v1771 = vmul.f32 %v1715, %v1659
  %v1772 = vmul.f32 %v1715, %v1660
  %v1773 = vmul.f32 %v1720, %v1661
  %v1774 = vmul.f32 %v1720, %v1662
  %v1775 = vmul.f32 %v1725, %v1663
  %v1776 = vmul.f32 %v1725, %v1664
  %v1777 = vmul.f32 %v1730, %v1665
  %v1778 = vmul.f32 %v1730, %v1666
  %v1779 = vmul.f32 %v1735, %v1667
  %v1780 = vmul.f32 %v1735, %v1668
  %v1781 = vmul.f32 %v1740, %v1669
  %v1782 = vmul.f32 %v1740, %v1670
  %v1783 = vmul.f32 %v1745, %v1671
  %v1784 = vmul.f32 %v1745, %v1672
  %v1785 = vmul.f32 %v1750, %v1673
  %v1786 = vmul.f32 %v1750, %v1674
  %v1787 = vmul.f32 %v1755, %v1675
  %v1788 = vmul.f32 %v1755, %v1676
  %v1789 = vadd.f32 %v1757, %v1759
  %v1790 = vadd.f32 %v1789, %v1761
  %v1791 = vadd.f32 %v1790, %v1763
  %v1792 = vadd.f32 %v1791, %v1765
  %v1793 = vadd.f32 %v1792, %v1767
  %v1794 = vadd.f32 %v1793, %v1769
  %v1795 = vadd.f32 %v1794, %v1771
  %v1796 = vadd.f32 %v1795, %v1773
  %v1797 = vadd.f32 %v1796, %v1775
  %v1798 = vadd.f32 %v1797, %v1777
  %v1799 = vadd.f32 %v1798, %v1779
  %v1800 = vadd.f32 %v1799, %v1781
  %v1801 = vadd.f32 %v1800, %v1783
  %v1802 = vadd.f32 %v1801, %v1785
  %v1803 = vadd.f32 %v1802, %v1787
  %v1804 = vrot.slane %v1803, 4
  %v1805 = vadd.f32 %v1803, %v1804
  %v1806 = vrot.slane %v1805, 2
  %v1807 = vadd.f32 %v1805, %v1806
  %v1808 = vrot.slane %v1807, 1
  %v1809 = vadd.f32 %v1807, %v1808
  %v1810 = vadd.f32 %v1758, %v1760
  %v1811 = vadd.f32 %v1810, %v1762
  %v1812 = vadd.f32 %v1811, %v1764
  %v1813 = vadd.f32 %v1812, %v1766
  %v1814 = vadd.f32 %v1813, %v1768
  %v1815 = vadd.f32 %v1814, %v1770
  %v1816 = vadd.f32 %v1815, %v1772
  %v1817 = vadd.f32 %v1816, %v1774
  %v1818 = vadd.f32 %v1817, %v1776
  %v1819 = vadd.f32 %v1818, %v1778
  %v1820 = vadd.f32 %v1819, %v1780
  %v1821 = vadd.f32 %v1820, %v1782
  %v1822 = vadd.f32 %v1821, %v1784
  %v1823 = vadd.f32 %v1822, %v1786
  %v1824 = vadd.f32 %v1823, %v1788
  %v1825 = vrot.slane %v1824, 4
  %v1826 = vadd.f32 %v1824, %v1825
  %v1827 = vrot.slane %v1826, 2
  %v1828 = vadd.f32 %v1826, %v1827
  %v1829 = vrot.slane %v1828, 1
  %v1830 = vadd.f32 %v1828, %v1829
  %v1833 = vrot.slane %v1830, 7
  %vm1834 = vcmask 1040384
  %v1835 = vsel %vm1834, %v1809, %v1833
  %v1837 = vlaneseq
  %vm1838 = vcmp.ge.s32.totalorder %v1837, 0
  %vm1839 = vcmp.lt.s32.totalorder %v1837, 256
  %vm1840 = vmand %vm1838, %vm1839
  %1841 = vst.msk [vmem:[%s7] sm:$0x3] %vm1840, %v1835
  %v1842 = vmul.f32 %v719, %v1360
  %v1843 = vmul.f32 %v720, %v1360
  %v1844 = vmul.f32 %v723, %v1365
  %v1845 = vmul.f32 %v724, %v1365
  %v1846 = vmul.f32 %v727, %v1370
  %v1847 = vmul.f32 %v728, %v1370
  %v1848 = vmul.f32 %v731, %v1375
  %v1849 = vmul.f32 %v732, %v1375
  %v1850 = vmul.f32 %v735, %v1380
  %v1851 = vmul.f32 %v736, %v1380
  %v1852 = vmul.f32 %v739, %v1385
  %v1853 = vmul.f32 %v740, %v1385
  %v1854 = vmul.f32 %v743, %v1390
  %v1855 = vmul.f32 %v744, %v1390
  %v1856 = vmul.f32 %v747, %v1395
  %v1857 = vmul.f32 %v748, %v1395
  %v1858 = vmul.f32 %v751, %v1400
  %v1859 = vmul.f32 %v752, %v1400
  %v1860 = vmul.f32 %v755, %v1405
  %v1861 = vmul.f32 %v756, %v1405
  %v1862 = vmul.f32 %v759, %v1410
  %v1863 = vmul.f32 %v760, %v1410
  %v1864 = vmul.f32 %v763, %v1415
  %v1865 = vmul.f32 %v764, %v1415
  %v1866 = vmul.f32 %v767, %v1420
  %v1867 = vmul.f32 %v768, %v1420
  %v1868 = vmul.f32 %v771, %v1425
  %v1869 = vmul.f32 %v772, %v1425
  %v1870 = vmul.f32 %v775, %v1430
  %v1871 = vmul.f32 %v776, %v1430
  %v1872 = vmul.f32 %v779, %v1435
  %v1873 = vmul.f32 %v780, %v1435
  %v1874 = vadd.f32 %v1842, %v1472
  %v1875 = vadd.f32 %v1843, %v1472
  %v1876 = vadd.f32 %v1844, %v1477
  %v1877 = vadd.f32 %v1845, %v1477
  %v1878 = vadd.f32 %v1846, %v1482
  %v1879 = vadd.f32 %v1847, %v1482
  %v1880 = vadd.f32 %v1848, %v1487
  %v1881 = vadd.f32 %v1849, %v1487
  %v1882 = vadd.f32 %v1850, %v1492
  %v1883 = vadd.f32 %v1851, %v1492
  %v1884 = vadd.f32 %v1852, %v1497
  %v1885 = vadd.f32 %v1853, %v1497
  %v1886 = vadd.f32 %v1854, %v1502
  %v1887 = vadd.f32 %v1855, %v1502
  %v1888 = vadd.f32 %v1856, %v1507
  %v1889 = vadd.f32 %v1857, %v1507
  %v1890 = vadd.f32 %v1858, %v1512
  %v1891 = vadd.f32 %v1859, %v1512
  %v1892 = vadd.f32 %v1860, %v1517
  %v1893 = vadd.f32 %v1861, %v1517
  %v1894 = vadd.f32 %v1862, %v1522
  %v1895 = vadd.f32 %v1863, %v1522
  %v1896 = vadd.f32 %v1864, %v1527
  %v1897 = vadd.f32 %v1865, %v1527
  %v1898 = vadd.f32 %v1866, %v1532
  %v1899 = vadd.f32 %v1867, %v1532
  %v1900 = vadd.f32 %v1868, %v1537
  %v1901 = vadd.f32 %v1869, %v1537
  %v1902 = vadd.f32 %v1870, %v1542
  %v1903 = vadd.f32 %v1871, %v1542
  %v1904 = vadd.f32 %v1872, %v1547
  %v1905 = vadd.f32 %v1873, %v1547
  %vm1906 = vcmp.ge.f32.partialorder %v1874, 0.0
  %vm1907 = vcmp.ge.f32.partialorder %v1875, 0.0
  %vm1908 = vcmp.ge.f32.partialorder %v1876, 0.0
  %vm1909 = vcmp.ge.f32.partialorder %v1877, 0.0
  %vm1910 = vcmp.ge.f32.partialorder %v1878, 0.0
  %vm1911 = vcmp.ge.f32.partialorder %v1879, 0.0
  %vm1912 = vcmp.ge.f32.partialorder %v1880, 0.0
  %vm1913 = vcmp.ge.f32.partialorder %v1881, 0.0
  %vm1914 = vcmp.ge.f32.partialorder %v1882, 0.0
  %vm1915 = vcmp.ge.f32.partialorder %v1883, 0.0
  %vm1916 = vcmp.ge.f32.partialorder %v1884, 0.0
  %vm1917 = vcmp.ge.f32.partialorder %v1885, 0.0
  %vm1918 = vcmp.ge.f32.partialorder %v1886, 0.0
  %vm1919 = vcmp.ge.f32.partialorder %v1887, 0.0
  %vm1920 = vcmp.ge.f32.partialorder %v1888, 0.0
  %vm1921 = vcmp.ge.f32.partialorder %v1889, 0.0
  %vm1922 = vcmp.ge.f32.partialorder %v1890, 0.0
  %vm1923 = vcmp.ge.f32.partialorder %v1891, 0.0
  %vm1924 = vcmp.ge.f32.partialorder %v1892, 0.0
  %vm1925 = vcmp.ge.f32.partialorder %v1893, 0.0
  %vm1926 = vcmp.ge.f32.partialorder %v1894, 0.0
  %vm1927 = vcmp.ge.f32.partialorder %v1895, 0.0
  %vm1928 = vcmp.ge.f32.partialorder %v1896, 0.0
  %vm1929 = vcmp.ge.f32.partialorder %v1897, 0.0
  %vm1930 = vcmp.ge.f32.partialorder %v1898, 0.0
  %vm1931 = vcmp.ge.f32.partialorder %v1899, 0.0
  %vm1932 = vcmp.ge.f32.partialorder %v1900, 0.0
  %vm1933 = vcmp.ge.f32.partialorder %v1901, 0.0
  %vm1934 = vcmp.ge.f32.partialorder %v1902, 0.0
  %vm1935 = vcmp.ge.f32.partialorder %v1903, 0.0
  %vm1936 = vcmp.ge.f32.partialorder %v1904, 0.0
  %vm1937 = vcmp.ge.f32.partialorder %v1905, 0.0
  %v1938 = vmul.f32 %v1874, 0.2
  %v1939 = vmul.f32 %v1875, 0.2
  %v1940 = vmul.f32 %v1876, 0.2
  %v1941 = vmul.f32 %v1877, 0.2
  %v1942 = vmul.f32 %v1878, 0.2
  %v1943 = vmul.f32 %v1879, 0.2
  %v1944 = vmul.f32 %v1880, 0.2
  %v1945 = vmul.f32 %v1881, 0.2
  %v1946 = vmul.f32 %v1882, 0.2
  %v1947 = vmul.f32 %v1883, 0.2
  %v1948 = vmul.f32 %v1884, 0.2
  %v1949 = vmul.f32 %v1885, 0.2
  %v1950 = vmul.f32 %v1886, 0.2
  %v1951 = vmul.f32 %v1887, 0.2
  %v1952 = vmul.f32 %v1888, 0.2
  %v1953 = vmul.f32 %v1889, 0.2
  %v1954 = vmul.f32 %v1890, 0.2
  %v1955 = vmul.f32 %v1891, 0.2
  %v1956 = vmul.f32 %v1892, 0.2
  %v1957 = vmul.f32 %v1893, 0.2
  %v1958 = vmul.f32 %v1894, 0.2
  %v1959 = vmul.f32 %v1895, 0.2
  %v1960 = vmul.f32 %v1896, 0.2
  %v1961 = vmul.f32 %v1897, 0.2
  %v1962 = vmul.f32 %v1898, 0.2
  %v1963 = vmul.f32 %v1899, 0.2
  %v1964 = vmul.f32 %v1900, 0.2
  %v1965 = vmul.f32 %v1901, 0.2
  %v1966 = vmul.f32 %v1902, 0.2
  %v1967 = vmul.f32 %v1903, 0.2
  %v1968 = vmul.f32 %v1904, 0.2
  %v1969 = vmul.f32 %v1905, 0.2
  %v1970 = vsel %vm1906, %v1874, %v1938
  %v1971 = vsel %vm1907, %v1875, %v1939
  %v1972 = vsel %vm1908, %v1876, %v1940
  %v1973 = vsel %vm1909, %v1877, %v1941
  %v1974 = vsel %vm1910, %v1878, %v1942
  %v1975 = vsel %vm1911, %v1879, %v1943
  %v1976 = vsel %vm1912, %v1880, %v1944
  %v1977 = vsel %vm1913, %v1881, %v1945
  %v1978 = vsel %vm1914, %v1882, %v1946
  %v1979 = vsel %vm1915, %v1883, %v1947
  %v1980 = vsel %vm1916, %v1884, %v1948
  %v1981 = vsel %vm1917, %v1885, %v1949
  %v1982 = vsel %vm1918, %v1886, %v1950
  %v1983 = vsel %vm1919, %v1887, %v1951
  %v1984 = vsel %vm1920, %v1888, %v1952
  %v1985 = vsel %vm1921, %v1889, %v1953
  %v1986 = vsel %vm1922, %v1890, %v1954
  %v1987 = vsel %vm1923, %v1891, %v1955
  %v1988 = vsel %vm1924, %v1892, %v1956
  %v1989 = vsel %vm1925, %v1893, %v1957
  %v1990 = vsel %vm1926, %v1894, %v1958
  %v1991 = vsel %vm1927, %v1895, %v1959
  %v1992 = vsel %vm1928, %v1896, %v1960
  %v1993 = vsel %vm1929, %v1897, %v1961
  %v1994 = vsel %vm1930, %v1898, %v1962
  %v1995 = vsel %vm1931, %v1899, %v1963
  %v1996 = vsel %vm1932, %v1900, %v1964
  %v1997 = vsel %vm1933, %v1901, %v1965
  %v1998 = vsel %vm1934, %v1902, %v1966
  %v1999 = vsel %vm1935, %v1903, %v1967
  %v2000 = vsel %vm1936, %v1904, %v1968
  %v2001 = vsel %vm1937, %v1905, %v1969
  %v2002 = vmul.f32 %v1680, %v1970
  %v2003 = vmul.f32 %v1680, %v1971
  %v2004 = vmul.f32 %v1685, %v1972
  %v2005 = vmul.f32 %v1685, %v1973
  %v2006 = vmul.f32 %v1690, %v1974
  %v2007 = vmul.f32 %v1690, %v1975
  %v2008 = vmul.f32 %v1695, %v1976
  %v2009 = vmul.f32 %v1695, %v1977
  %v2010 = vmul.f32 %v1700, %v1978
  %v2011 = vmul.f32 %v1700, %v1979
  %v2012 = vmul.f32 %v1705, %v1980
  %v2013 = vmul.f32 %v1705, %v1981
  %v2014 = vmul.f32 %v1710, %v1982
  %v2015 = vmul.f32 %v1710, %v1983
  %v2016 = vmul.f32 %v1715, %v1984
  %v2017 = vmul.f32 %v1715, %v1985
  %v2018 = vmul.f32 %v1720, %v1986
  %v2019 = vmul.f32 %v1720, %v1987
  %v2020 = vmul.f32 %v1725, %v1988
  %v2021 = vmul.f32 %v1725, %v1989
  %v2022 = vmul.f32 %v1730, %v1990
  %v2023 = vmul.f32 %v1730, %v1991
  %v2024 = vmul.f32 %v1735, %v1992
  %v2025 = vmul.f32 %v1735, %v1993
  %v2026 = vmul.f32 %v1740, %v1994
  %v2027 = vmul.f32 %v1740, %v1995
  %v2028 = vmul.f32 %v1745, %v1996
  %v2029 = vmul.f32 %v1745, %v1997
  %v2030 = vmul.f32 %v1750, %v1998
  %v2031 = vmul.f32 %v1750, %v1999
  %v2032 = vmul.f32 %v1755, %v2000
  %v2033 = vmul.f32 %v1755, %v2001
  %v2034 = vadd.f32 %v2002, %v2004
  %v2035 = vadd.f32 %v2034, %v2006
  %v2036 = vadd.f32 %v2035, %v2008
  %v2037 = vadd.f32 %v2036, %v2010
  %v2038 = vadd.f32 %v2037, %v2012
  %v2039 = vadd.f32 %v2038, %v2014
  %v2040 = vadd.f32 %v2039, %v2016
  %v2041 = vadd.f32 %v2040, %v2018
  %v2042 = vadd.f32 %v2041, %v2020
  %v2043 = vadd.f32 %v2042, %v2022
  %v2044 = vadd.f32 %v2043, %v2024
  %v2045 = vadd.f32 %v2044, %v2026
  %v2046 = vadd.f32 %v2045, %v2028
  %v2047 = vadd.f32 %v2046, %v2030
  %v2048 = vadd.f32 %v2047, %v2032
  %v2049 = vrot.slane %v2048, 4
  %v2050 = vadd.f32 %v2048, %v2049
  %v2051 = vrot.slane %v2050, 2
  %v2052 = vadd.f32 %v2050, %v2051
  %v2053 = vrot.slane %v2052, 1
  %v2054 = vadd.f32 %v2052, %v2053
  %v2055 = vadd.f32 %v2003, %v2005
  %v2056 = vadd.f32 %v2055, %v2007
  %v2057 = vadd.f32 %v2056, %v2009
  %v2058 = vadd.f32 %v2057, %v2011
  %v2059 = vadd.f32 %v2058, %v2013
  %v2060 = vadd.f32 %v2059, %v2015
  %v2061 = vadd.f32 %v2060, %v2017
  %v2062 = vadd.f32 %v2061, %v2019
  %v2063 = vadd.f32 %v2062, %v2021
  %v2064 = vadd.f32 %v2063, %v2023
  %v2065 = vadd.f32 %v2064, %v2025
  %v2066 = vadd.f32 %v2065, %v2027
  %v2067 = vadd.f32 %v2066, %v2029
  %v2068 = vadd.f32 %v2067, %v2031
  %v2069 = vadd.f32 %v2068, %v2033
  %v2070 = vrot.slane %v2069, 4
  %v2071 = vadd.f32 %v2069, %v2070
  %v2072 = vrot.slane %v2071, 2
  %v2073 = vadd.f32 %v2071, %v2072
  %v2074 = vrot.slane %v2073, 1
  %v2075 = vadd.f32 %v2073, %v2074
  %v2078 = vrot.slane %v2075, 7
  %v2079 = vsel %vm1834, %v2054, %v2078
  %s2081 = scalar_lea.vmem %s7, 2
  %2082 = vst.msk [vmem:[%s2081] sm:$0x3] %vm1840, %v2079
  // Predicated region
  $region30: #{pixel_discriminator_forward.1} parent=0 // pred_check
    _
  $region31: #{pixel_discriminator_forward.1} parent=0 // pred_check_branch
    %2084 = sbr.rel (0) target = $region33
  $region32: #{pixel_discriminator_forward.1} parent=0 // pred_region
    _
  $region33: #{pixel_discriminator_forward.1} parent=0 // pred_fallthru
    _
  // Predicated region
  $region34: #{pixel_discriminator_forward.1} parent=0 // pred_check
    _
  $region35: #{pixel_discriminator_forward.1} parent=0 // pred_check_branch
    %2086 = sbr.rel (0) target = $region37
  $region36: #{pixel_discriminator_forward.1} parent=0 // pred_region
    _
  $region37: #{pixel_discriminator_forward.1} parent=0 // pred_fallthru
    _

</llo_original>
